<compile_context>
chip_gen: v5e
topology: v5e:2x2
jax: 0.10.0
libtpu: 0.0.40
codegen_flags: <defaults>
</compile_context>

<pallas_src>
from functools import partial

import jax
import jax.numpy as jnp
from jax.experimental import pallas as pl
from jax.experimental.pallas import tpu as pltpu

BN_EPS = 1e-5
_VMEM_BUDGET_BYTES = 40 * 1024 * 1024  # conservative: fits v5e/v6e/v7x scoped VMEM


def _bn_z(x_ref, w_ref, use_bn):
    """Linear (no bias) + optional BatchNorm1d(affine=False) with batch stats."""
    logits = jnp.dot(x_ref[...], w_ref[...],
                     preferred_element_type=jnp.float32)          # [B, TV] f32
    if not use_bn:
        return logits
    mean = jnp.mean(logits, axis=0, keepdims=True)                # [1, TV]
    centered = logits - mean
    var = jnp.mean(centered * centered, axis=0, keepdims=True)    # biased var
    return centered * jax.lax.rsqrt(var + BN_EPS)


def _decoder_kernel_cached(x_ref, w_ref, o_ref,
                           m_ref, l_ref, mt_ref, e_ref, *, use_bn):
    # x_ref: [B, T] resident; w_ref: [T, TV] streamed (pass 0 only);
    # o_ref: [B, TV]; m_ref/l_ref: [B, 1] f32 running max / exp-sum;
    # mt_ref: [nv, B, 1] f32 per-tile max; e_ref: [nv, B, TV] bf16 exp cache.
    p = pl.program_id(0)   # 0 = stats pass, 1 = rescale/write pass
    j = pl.program_id(1)   # vocab tile index

    @pl.when((p == 0) & (j == 0))
    def _init():
        m_ref[...] = jnp.full_like(m_ref, -jnp.inf)
        l_ref[...] = jnp.zeros_like(l_ref)

    @pl.when(p == 0)
    def _stats():
        z = _bn_z(x_ref, w_ref, use_bn)                           # [B, TV] f32
        m_loc = jnp.max(z, axis=1, keepdims=True)                 # [B, 1]
        e = jnp.exp(z - m_loc)                                    # in (0, 1]
        s = jnp.sum(e, axis=1, keepdims=True)
        m_old = m_ref[...]
        m_new = jnp.maximum(m_old, m_loc)
        l_ref[...] = (l_ref[...] * jnp.exp(m_old - m_new)
                      + s * jnp.exp(m_loc - m_new))
        m_ref[...] = m_new
        mt_ref[j] = m_loc
        e_ref[j] = e.astype(e_ref.dtype)

    @pl.when(p == 1)
    def _write():
        # Exact normalization (approx reciprocal broke row-sum == 1 by ~1e-3).
        scale = jnp.exp(mt_ref[j] - m_ref[...]) / l_ref[...]      # [B, 1] f32
        o_ref[...] = (e_ref[j].astype(jnp.float32) * scale).astype(o_ref.dtype)


def _decoder_kernel_recompute(x_ref, w_ref, o_ref, m_ref, l_ref, *, use_bn):
    # Fallback when the bf16 exp cache (B*V*2 bytes) does not fit VMEM:
    # re-stream the weights and recompute the matmul/BN/exp in pass 1.
    p = pl.program_id(0)
    j = pl.program_id(1)
    z = _bn_z(x_ref, w_ref, use_bn)

    @pl.when((p == 0) & (j == 0))
    def _init():
        m_ref[...] = jnp.full_like(m_ref, -jnp.inf)
        l_ref[...] = jnp.zeros_like(l_ref)

    @pl.when(p == 0)
    def _stats():
        m_old = m_ref[...]
        m_new = jnp.maximum(m_old, jnp.max(z, axis=1, keepdims=True))
        l_ref[...] = (l_ref[...] * jnp.exp(m_old - m_new)
                      + jnp.sum(jnp.exp(z - m_new), axis=1, keepdims=True))
        m_ref[...] = m_new

    @pl.when(p == 1)
    def _write():
        o_ref[...] = (jnp.exp(z - m_ref[...]) / l_ref[...]).astype(o_ref.dtype)


def _pick_vocab_tile(V, requested):
    # Never pad the vocab: zero-padded columns would get var=0 under BN and
    # still enter every row's softmax.  Choose the largest lane-dense
    # (multiple-of-128) tile <= requested that divides V exactly.
    if V % 128 != 0:
        return V                      # single full-width block (full-dim rule)
    t = max(128, min((requested // 128) * 128, V))
    while V % t != 0:
        t -= 128
    return t


def prodlda_decoder(inputs, beta_weight_t, *, vocab_tile=2048,
                    out_dtype=jnp.bfloat16, use_batch_norm=True,
                    cache_exp=None):
    """inputs: [B, num_topics]; beta_weight_t: [num_topics, vocab] (beta.weight.T)."""
    B, T = inputs.shape
    T2, V = beta_weight_t.shape
    assert T == T2, "num_topics mismatch between inputs and beta weight"
    # NOTE: the batch dimension must stay whole so BatchNorm batch statistics
    # are exact per vocab tile -- it is never part of the grid below.

    tile = _pick_vocab_tile(V, vocab_tile)
    nv = V // tile

    w_item = jnp.dtype(beta_weight_t.dtype).itemsize
    in_item = jnp.dtype(inputs.dtype).itemsize
    out_item = jnp.dtype(out_dtype).itemsize

    ecache_bytes = B * V * 2 + nv * B * 4             # bf16 exp cache + tile max
    pipe_bytes = (2 * T * tile * w_item               # weight double-buffer
                  + 2 * B * tile * out_item           # output double-buffer
                  + 2 * B * T * in_item               # resident activations
                  + 2 * B * 4 * 2)                    # m, l scratch
    if cache_exp is None:
        cache_exp = (ecache_bytes + pipe_bytes) <= _VMEM_BUDGET_BYTES

    scratch = [pltpu.VMEM((B, 1), jnp.float32),       # running row max  (m)
               pltpu.VMEM((B, 1), jnp.float32)]       # running exp-sum  (l)

    if cache_exp:
        kernel = partial(_decoder_kernel_cached, use_bn=use_batch_norm)
        scratch += [pltpu.VMEM((nv, B, 1), jnp.float32),        # per-tile max
                    pltpu.VMEM((nv, B, tile), jnp.bfloat16)]    # exp cache
        # Stream weights only in pass 0; pin the block index during pass 1 so
        # no weight DMA is issued while writing the output.
        w_index = lambda p, j, nv=nv: (0, j * (1 - p) + p * (nv - 1))
        flops = 2 * B * T * V
        transcendentals = B * V + 2 * B * nv
        bytes_accessed = T * V * w_item + B * T * in_item + B * V * out_item
        vmem_need = ecache_bytes + pipe_bytes
    else:
        kernel = partial(_decoder_kernel_recompute, use_bn=use_batch_norm)
        w_index = lambda p, j: (0, j)                 # weights streamed twice
        flops = 2 * 2 * B * T * V
        transcendentals = 2 * B * V
        bytes_accessed = 2 * T * V * w_item + B * T * in_item + B * V * out_item
        vmem_need = pipe_bytes

    grid_spec = pltpu.PrefetchScalarGridSpec(
        num_scalar_prefetch=0,
        grid=(2, nv),                                 # (pass, vocab tile)
        in_specs=[
            pl.BlockSpec((B, T), lambda p, j: (0, 0)),        # resident acts
            pl.BlockSpec((T, tile), w_index),                 # streamed weights
        ],
        # Output block index is pinned at 0 during the stats pass (nothing is
        # written, nothing flushed) and walks the vocab tiles in the write
        # pass; each block is written exactly once right after being filled.
        out_specs=pl.BlockSpec((B, tile), lambda p, j: (0, j * p)),
        scratch_shapes=scratch,
    )

    vmem_limit = int(min(max(vmem_need + (4 << 20), 16 << 20), 64 << 20))

    return pl.pallas_call(
        kernel,
        out_shape=jax.ShapeDtypeStruct((B, V), out_dtype),
        grid_spec=grid_spec,
        compiler_params=pltpu.CompilerParams(
            dimension_semantics=("arbitrary", "arbitrary"),
            vmem_limit_bytes=vmem_limit,
        ),
        cost_estimate=pl.CostEstimate(flops=flops,
                                      transcendentals=transcendentals,
                                      bytes_accessed=bytes_accessed),
    )(inputs, beta_weight_t)


def _reference(inputs, beta_weight_t):
    x = inputs.astype(jnp.float32)
    w = beta_weight_t.astype(jnp.float32)
    logits = x @ w
    mean = jnp.mean(logits, axis=0, keepdims=True)
    var = jnp.mean((logits - mean) ** 2, axis=0, keepdims=True)
    z = (logits - mean) / jnp.sqrt(var + BN_EPS)
    return jax.nn.softmax(z, axis=1)


if __name__ == "__main__":
    # TODO(synk): train-mode nn.Dropout (stochastic mask + 1/(1-p) scale) is not
    # implemented; inputs pass through as in eval mode.  BatchNorm uses batch
    # statistics (training-mode BN of a freshly constructed affine=False module).
    vocab_size, num_topics, batch = 1024, 32, 64

    key = jax.random.PRNGKey(0)
    k_x, k_w = jax.random.split(key)

    # nn.Linear(num_topics, vocab_size, bias=False).weight is [vocab, topics];
    # store it transposed as [topics, vocab] in bf16 for the MXU.
    bound = 1.0 / jnp.sqrt(jnp.float32(num_topics))
    beta_weight = jax.random.uniform(
        k_w, (vocab_size, num_topics), jnp.float32, minval=-bound, maxval=bound
    )
    beta_weight_t = beta_weight.T.astype(jnp.bfloat16)            # [T, V] bf16

    # Topic-proportion-like inputs (softmax of a gaussian draw), bf16 operand.
    inputs = jax.nn.softmax(
        jax.random.normal(k_x, (batch, num_topics), jnp.float32), axis=-1
    ).astype(jnp.bfloat16)

    ref = _reference(inputs, beta_weight_t)

    # Exercise both the exp-cache fast path and the weight-recompute fallback,
    # with the vocab split into two tiles to cover the online-softmax merge.
    for use_cache in (True, False):
        out = prodlda_decoder(inputs, beta_weight_t,
                              vocab_tile=512, cache_exp=use_cache)
        out = jax.block_until_ready(out)
        assert out.shape == (batch, vocab_size)
        out32 = out.astype(jnp.float32)
        max_err = float(jnp.max(jnp.abs(out32 - ref)))
        assert max_err < 1.5e-3, f"cache_exp={use_cache}: max abs error {max_err}"
        row_err = float(jnp.max(jnp.abs(jnp.sum(out32, axis=1) - 1.0)))
        assert row_err < 2e-3, f"cache_exp={use_cache}: row-sum error {row_err}"

    print("KERNEL_OK")
</pallas_src>

<mosaic_0001>
module attributes {stable_mosaic.version = 11 : i64} {
  func.func @_decoder_kernel_cached(%arg0: i32, %arg1: i32, %arg2: memref<64x32xbf16, #tpu.memory_space<vmem>>, %arg3: memref<32x512xbf16, #tpu.memory_space<vmem>>, %arg4: memref<64x512xbf16, #tpu.memory_space<vmem>>, %arg5: memref<64x1xf32, #tpu.memory_space<vmem>>, %arg6: memref<64x1xf32, #tpu.memory_space<vmem>>, %arg7: memref<2x64x1xf32, #tpu.memory_space<vmem>>, %arg8: memref<2x64x512xbf16, #tpu.memory_space<vmem>>) attributes {dimension_semantics = [#tpu.dimension_semantics<arbitrary>, #tpu.dimension_semantics<arbitrary>], iteration_bounds = array<i64: 2, 2>, scalar_prefetch = 0 : i64, scratch_operands = 4 : i64, tpu.core_type = #tpu.core_type<tc>, window_params = [{pipeline_mode = #tpu.pipeline_mode<synchronous>, transform_indices = @transform_0, window_bounds = array<i64: 64, 32>}, {transform_indices = @transform_1, window_bounds = array<i64: 32, 512>}, {transform_indices = @transform_2, window_bounds = array<i64: 64, 512>}]} {
    %c0_i32 = arith.constant 0 : i32
    %0 = arith.cmpi eq, %arg0, %c0_i32 : i32
    %c0_i32_0 = arith.constant 0 : i32
    %1 = arith.cmpi eq, %arg1, %c0_i32_0 : i32
    %2 = arith.andi %0, %1 : i1
    %3 = arith.extui %2 : i1 to i32
    %c0_i32_1 = arith.constant 0 : i32
    %4 = arith.cmpi ne, %3, %c0_i32_1 : i32
    scf.if %4 {
      %cst = arith.constant 0xFF800000 : f32
      %11 = vector.broadcast %cst : f32 to vector<64x1xf32>
      %c0 = arith.constant 0 : index
      %c0_5 = arith.constant 0 : index
      %12 = vector.load %arg5[%c0, %c0_5] : memref<64x1xf32, #tpu.memory_space<vmem>>, vector<64x1xf32>
      tpu.vector_store %arg5[%c0, %c0_5], %11 {strides = array<i32>} : memref<64x1xf32, #tpu.memory_space<vmem>>, vector<64x1xf32>,
      %cst_6 = arith.constant 0.000000e+00 : f32
      %13 = vector.broadcast %cst_6 : f32 to vector<64x1xf32>
      %c0_7 = arith.constant 0 : index
      %c0_8 = arith.constant 0 : index
      %14 = vector.load %arg6[%c0_7, %c0_8] : memref<64x1xf32, #tpu.memory_space<vmem>>, vector<64x1xf32>
      tpu.vector_store %arg6[%c0_7, %c0_8], %13 {strides = array<i32>} : memref<64x1xf32, #tpu.memory_space<vmem>>, vector<64x1xf32>,
    } else {
    }
    %c0_i32_2 = arith.constant 0 : i32
    %5 = arith.cmpi eq, %arg0, %c0_i32_2 : i32
    %6 = arith.extui %5 : i1 to i32
    %c0_i32_3 = arith.constant 0 : i32
    %7 = arith.cmpi ne, %6, %c0_i32_3 : i32
    scf.if %7 {
      %c0 = arith.constant 0 : index
      %c0_5 = arith.constant 0 : index
      %11 = vector.load %arg2[%c0, %c0_5] : memref<64x32xbf16, #tpu.memory_space<vmem>>, vector<64x32xbf16>
      %c0_6 = arith.constant 0 : index
      %c0_7 = arith.constant 0 : index
      %12 = vector.load %arg3[%c0_6, %c0_7] : memref<32x512xbf16, #tpu.memory_space<vmem>>, vector<32x512xbf16>
      %cst = arith.constant dense<0.000000e+00> : vector<64x512xf32>
      %13 = tpu.matmul %11, %12, %cst {dimension_numbers = #tpu.dot_dimension_numbers<[1], [0], [0], [1], [0, 0, 1, 1], [], []>} : vector<64x32xbf16>, vector<32x512xbf16>, vector<64x512xf32> -> vector<64x512xf32>
      %cst_8 = arith.constant dense<0.000000e+00> : vector<512xf32>
      %14 = vector.multi_reduction <add>, %13, %cst_8 [0] : vector<64x512xf32> to vector<512xf32>
      %15 = vector.shape_cast %14 : vector<512xf32> to vector<1x512xf32>
      %cst_9 = arith.constant 6.400000e+01 : f32
      %16 = vector.broadcast %cst_9 : f32 to vector<1x512xf32>
      %17 = arith.divf %15, %16 : vector<1x512xf32>
      %18 = vector.broadcast %17 : vector<1x512xf32> to vector<64x512xf32>
      %19 = arith.subf %13, %18 : vector<64x512xf32>
      %20 = arith.mulf %19, %19 : vector<64x512xf32>
      %cst_10 = arith.constant dense<0.000000e+00> : vector<512xf32>
      %21 = vector.multi_reduction <add>, %20, %cst_10 [0] : vector<64x512xf32> to vector<512xf32>
      %22 = vector.shape_cast %21 : vector<512xf32> to vector<1x512xf32>
      %cst_11 = arith.constant 6.400000e+01 : f32
      %23 = vector.broadcast %cst_11 : f32 to vector<1x512xf32>
      %24 = arith.divf %22, %23 : vector<1x512xf32>
      %cst_12 = arith.constant 9.99999974E-6 : f32
      %25 = vector.broadcast %cst_12 : f32 to vector<1x512xf32>
      %26 = arith.addf %24, %25 : vector<1x512xf32>
      %27 = math.rsqrt %26 : vector<1x512xf32>
      %28 = vector.broadcast %27 : vector<1x512xf32> to vector<64x512xf32>
      %29 = arith.mulf %19, %28 : vector<64x512xf32>
      %cst_13 = arith.constant dense<0xFF800000> : vector<64xf32>
      %30 = vector.multi_reduction <maximumf>, %29, %cst_13 [1] : vector<64x512xf32> to vector<64xf32>
      %31 = vector.shape_cast %30 : vector<64xf32> to vector<64x1xf32>
      %32 = vector.broadcast %31 : vector<64x1xf32> to vector<64x512xf32>
      %33 = arith.subf %29, %32 : vector<64x512xf32>
      %34 = math.exp %33 : vector<64x512xf32>
      %cst_14 = arith.constant dense<0.000000e+00> : vector<64xf32>
      %35 = vector.multi_reduction <add>, %34, %cst_14 [1] : vector<64x512xf32> to vector<64xf32>
      %36 = vector.shape_cast %35 : vector<64xf32> to vector<64x1xf32>
      %c0_15 = arith.constant 0 : index
      %c0_16 = arith.constant 0 : index
      %37 = vector.load %arg5[%c0_15, %c0_16] : memref<64x1xf32, #tpu.memory_space<vmem>>, vector<64x1xf32>
      %38 = arith.maximumf %37, %31 : vector<64x1xf32>
      %c0_17 = arith.constant 0 : index
      %c0_18 = arith.constant 0 : index
      %39 = vector.load %arg6[%c0_17, %c0_18] : memref<64x1xf32, #tpu.memory_space<vmem>>, vector<64x1xf32>
      %40 = arith.subf %37, %38 : vector<64x1xf32>
      %41 = math.exp %40 : vector<64x1xf32>
      %42 = arith.mulf %39, %41 : vector<64x1xf32>
      %43 = arith.subf %31, %38 : vector<64x1xf32>
      %44 = math.exp %43 : vector<64x1xf32>
      %45 = arith.mulf %36, %44 : vector<64x1xf32>
      %46 = arith.addf %42, %45 : vector<64x1xf32>
      %c0_19 = arith.constant 0 : index
      %c0_20 = arith.constant 0 : index
      %47 = vector.load %arg6[%c0_19, %c0_20] : memref<64x1xf32, #tpu.memory_space<vmem>>, vector<64x1xf32>
      tpu.vector_store %arg6[%c0_19, %c0_20], %46 {strides = array<i32>} : memref<64x1xf32, #tpu.memory_space<vmem>>, vector<64x1xf32>,
      %c0_21 = arith.constant 0 : index
      %c0_22 = arith.constant 0 : index
      %48 = vector.load %arg5[%c0_21, %c0_22] : memref<64x1xf32, #tpu.memory_space<vmem>>, vector<64x1xf32>
      tpu.vector_store %arg5[%c0_21, %c0_22], %38 {strides = array<i32>} : memref<64x1xf32, #tpu.memory_space<vmem>>, vector<64x1xf32>,
      %49 = arith.index_cast %arg1 : i32 to index
      %c0_23 = arith.constant 0 : index
      %c0_24 = arith.constant 0 : index
      %50 = vector.load %arg7[%49, %c0_23, %c0_24] : memref<2x64x1xf32, #tpu.memory_space<vmem>>, vector<1x64x1xf32>
      %51 = vector.shape_cast %50 : vector<1x64x1xf32> to vector<64x1xf32>
      %52 = vector.shape_cast %31 : vector<64x1xf32> to vector<1x64x1xf32>
      tpu.vector_store %arg7[%49, %c0_23, %c0_24], %52 {strides = array<i32>} : memref<2x64x1xf32, #tpu.memory_space<vmem>>, vector<1x64x1xf32>,
      %53 = arith.truncf %34 : vector<64x512xf32> to vector<64x512xbf16>
      %54 = arith.index_cast %arg1 : i32 to index
      %c0_25 = arith.constant 0 : index
      %c0_26 = arith.constant 0 : index
      %55 = vector.load %arg8[%54, %c0_25, %c0_26] : memref<2x64x512xbf16, #tpu.memory_space<vmem>>, vector<1x64x512xbf16>
      %56 = vector.shape_cast %55 : vector<1x64x512xbf16> to vector<64x512xbf16>
      %57 = vector.shape_cast %53 : vector<64x512xbf16> to vector<1x64x512xbf16>
      tpu.vector_store %arg8[%54, %c0_25, %c0_26], %57 {strides = array<i32>} : memref<2x64x512xbf16, #tpu.memory_space<vmem>>, vector<1x64x512xbf16>,
    } else {
    }
    %c1_i32 = arith.constant 1 : i32
    %8 = arith.cmpi eq, %arg0, %c1_i32 : i32
    %9 = arith.extui %8 : i1 to i32
    %c0_i32_4 = arith.constant 0 : i32
    %10 = arith.cmpi ne, %9, %c0_i32_4 : i32
    scf.if %10 {
      %11 = arith.index_cast %arg1 : i32 to index
      %c0 = arith.constant 0 : index
      %c0_5 = arith.constant 0 : index
      %12 = vector.load %arg7[%11, %c0, %c0_5] : memref<2x64x1xf32, #tpu.memory_space<vmem>>, vector<1x64x1xf32>
      %13 = vector.shape_cast %12 : vector<1x64x1xf32> to vector<64x1xf32>
      %c0_6 = arith.constant 0 : index
      %c0_7 = arith.constant 0 : index
      %14 = vector.load %arg5[%c0_6, %c0_7] : memref<64x1xf32, #tpu.memory_space<vmem>>, vector<64x1xf32>
      %15 = arith.subf %13, %14 : vector<64x1xf32>
      %16 = math.exp %15 : vector<64x1xf32>
      %c0_8 = arith.constant 0 : index
      %c0_9 = arith.constant 0 : index
      %17 = vector.load %arg6[%c0_8, %c0_9] : memref<64x1xf32, #tpu.memory_space<vmem>>, vector<64x1xf32>
      %18 = arith.divf %16, %17 : vector<64x1xf32>
      %19 = arith.index_cast %arg1 : i32 to index
      %c0_10 = arith.constant 0 : index
      %c0_11 = arith.constant 0 : index
      %20 = vector.load %arg8[%19, %c0_10, %c0_11] : memref<2x64x512xbf16, #tpu.memory_space<vmem>>, vector<1x64x512xbf16>
      %21 = vector.shape_cast %20 : vector<1x64x512xbf16> to vector<64x512xbf16>
      %22 = arith.extf %21 : vector<64x512xbf16> to vector<64x512xf32>
      %23 = vector.broadcast %18 : vector<64x1xf32> to vector<64x512xf32>
      %24 = arith.mulf %22, %23 : vector<64x512xf32>
      %25 = arith.truncf %24 : vector<64x512xf32> to vector<64x512xbf16>
      %c0_12 = arith.constant 0 : index
      %c0_13 = arith.constant 0 : index
      %26 = vector.load %arg4[%c0_12, %c0_13] : memref<64x512xbf16, #tpu.memory_space<vmem>>, vector<64x512xbf16>
      tpu.vector_store %arg4[%c0_12, %c0_13], %25 {strides = array<i32>} : memref<64x512xbf16, #tpu.memory_space<vmem>>, vector<64x512xbf16>,
    } else {
    }
    return
  }
  func.func @transform_0(%arg0: i32, %arg1: i32) -> (i32, i32) {
    %c0_i32 = arith.constant 0 : i32
    %c0_i32_0 = arith.constant 0 : i32
    %c0_i32_1 = arith.constant 0 : i32
    return %c0_i32, %c0_i32_0 : i32, i32
  }
  func.func @transform_1(%arg0: i32, %arg1: i32) -> (i32, i32) {
    %c1_i32 = arith.constant 1 : i32
    %0 = arith.subi %c1_i32, %arg0 : i32
    %1 = arith.muli %arg1, %0 : i32
    %c1_i32_0 = arith.constant 1 : i32
    %2 = arith.muli %arg0, %c1_i32_0 : i32
    %3 = arith.addi %1, %2 : i32
    %c0_i32 = arith.constant 0 : i32
    %c0_i32_1 = arith.constant 0 : i32
    return %c0_i32, %3 : i32, i32
  }
  func.func @transform_2(%arg0: i32, %arg1: i32) -> (i32, i32) {
    %0 = arith.muli %arg1, %arg0 : i32
    %c0_i32 = arith.constant 0 : i32
    %c0_i32_0 = arith.constant 0 : i32
    return %c0_i32, %0 : i32, i32
  }
}

</mosaic_0001>

<llo_original>
// kernel: tpu_custom_call.1
$region0: #{tpu_custom_call.1}
  #allocation0 [shape = 'u32[]', space=smem, size = 0x4, offset = 0x4, fixed_abs, tag = 'smem constant byte address 0x4 - core index']
  #allocation1 [shape = 'u32[72,128]{1,0:T(1,128)}', space=vmem, size = 0x9000, scoped, tag = 'internal scratch']
  #allocation2 [shape = 'f32[64,1]{1,0:T(8,128)}', space=vmem, size = 0x8000, scoped, tag = 'scratch operand']
  #allocation3 [shape = 'f32[64,1]{1,0:T(8,128)}', space=vmem, size = 0x8000, scoped, tag = 'scratch operand']
  #allocation4 [shape = 'f32[2,64,1]{2,1,0:T(8,128)}', space=vmem, size = 0x10000, scoped, tag = 'scratch operand']
  #allocation5 [shape = 'bf16[2,64,512]{2,1,0:T(8,128)(2,1)}', space=vmem, size = 0x20000, scoped, tag = 'scratch operand']
  %s0 = inlined_call_operand.vmem [shape: bf16[64,32], index: 0, kind: input, shape index: {}]
  %s1 = inlined_call_operand.hbm [shape: bf16[32,1024], index: 1, kind: input, shape index: {}]
  %s2 = inlined_call_operand.hbm [shape: bf16[64,1024], index: 2, kind: output, shape index: {}]
  %s3 = sld [smem:[#allocation0]]
  $region57: #{tpu_custom_call.1} parent=0
    _
  %s5 = ssub.s32 1, %s3
  %s6 = scalar_select 0, %s5, %s3
  $region1: #{tpu_custom_call.1} parent=0
    #allocation6 [shape = 'u8[65536]{0}', space=vmem, size = 0x10000, scoped, tag = 'input window, operand 1']
    #allocation7 [shape = 's32[2]{0}', space=sflag, size = 0x8, scoped, tag = 'scoped memory for tpu_custom_call.1']
    #allocation8 [shape = 's32[2]{0}', space=sflag, size = 0x8, scoped, tag = 'scoped memory for tpu_custom_call.1']
    #allocation9 [shape = 'u8[131072]{0}', space=vmem, size = 0x20000, scoped, tag = 'output window, operand 0']
    %7 = vsyncpa [#allocation7], 0
    %s8 = scalar_lea.sflag [#allocation7], 1
    %9 = vsyncpa %s8, 0
    %10 = vsyncpa [#allocation8], 0
    %s11 = scalar_lea.sflag [#allocation8], 1
    %12 = vsyncpa %s11, 0
    loop: start=0, step=1, limit=6
    $region2: #{tpu_custom_call.1} parent=1 // loop_pre_header
      _
    $region3: #{tpu_custom_call.1} parent=1 // loop_header
      %s14 = sphi 0, %s18
      %p15 = scmp.ge.s32.totalorder %s14, 6
      %s21 = sphi 0, %s33
      %s22 = sphi 0, %s29
      %s23 = sphi 0, %s21
      %s24 = sphi 0, %s22
      %s25 = sphi 0, %s23
      %s26 = sphi 0, %s24
      %s34 = sphi 0, %s34
      %s36 = sphi 0, %s34
      %s37 = sphi 0, %s36
      %s51 = sphi 0, %s37
      %s63 = sphi 0, %s65
      %s66 = sphi 0, %s63
      %s67 = sphi 0, %s66
      %s83 = sphi 0, %s67
      %s91 = sphi 0, %s93
      %s94 = sphi 0, %s91
      %s95 = sphi 0, %s94
      %s111 = sphi 0, %s95
    $region4: #{tpu_custom_call.1} parent=1 // loop_header_branch
      %17 = sbr.rel (%p15) target = $region8
    $region5: #{tpu_custom_call.1} parent=1 // loop_body
      %s19 = ssub.s32 %s14, 1
      %s20 = ssub.s32 %s14, 2
      %s27 = sadd.s32 1, %s22
      %p28 = scmp.ge.s32.totalorder %s27, 2
      %s29 = scalar_select %p28, 0, %s27
      %s30 = sadd.s32 1, %s21
      %s31 = scalar_select %p28, %s30, %s21
      %p32 = scmp.ge.s32.totalorder %s31, 2
      %s33 = scalar_select %p32, 0, %s31
      %s35 = sadd.s32 %s34, 1
      %p38 = scmp.eq.s32.totalorder %s14, 3
      %p39 = scmp.ne.s32.totalorder %s34, %s36
      %p40 = scmp.eq.s32.totalorder %s14, 0
      %p41 = por %p39, %p40
      %p42 = scmp.ne.s32.totalorder %s34, %s36
      %p43 = scmp.eq.s32.totalorder %s19, 3
      %p44 = por %p42, %p43
      %p45 = scmp.ne.s32.totalorder %s36, %s37
      %p46 = scmp.eq.s32.totalorder %s19, 0
      %p47 = por %p45, %p46
      %p48 = scmp.ne.s32.totalorder %s36, %s37
      %p49 = scmp.eq.s32.totalorder %s20, 3
      %p50 = por %p48, %p49
      %p52 = scmp.ne.s32.totalorder %s37, %s51
      %p53 = scmp.eq.s32.totalorder %s20, 0
      %p54 = por %p52, %p53
      %s55 = ssub.s32 1, %s21
      %s56 = smul.u32 %s22, %s55
      %s57 = sadd.s32 %s56, %s21
      %s58 = ssub.s32 1, %s33
      %s59 = smul.u32 %s29, %s58
      %s60 = sadd.s32 %s59, %s33
      %s61 = ssub.s32 %s57, %s60
      %p62 = scmp.eq.s32.totalorder %s61, 0
      %s64 = sadd.s32 %s63, 1
      %s65 = scalar_select %p62, %s63, %s64
      %p68 = pneg %p62
      %p69 = scmp.eq.s32.totalorder %s14, 3
      %p70 = por %p68, %p69
      %p71 = scmp.ne.s32.totalorder %s63, %s66
      %p72 = scmp.eq.s32.totalorder %s14, 0
      %p73 = por %p71, %p72
      %p74 = scmp.ne.s32.totalorder %s63, %s66
      %p75 = scmp.eq.s32.totalorder %s19, 3
      %p76 = por %p74, %p75
      %p77 = scmp.ne.s32.totalorder %s66, %s67
      %p78 = scmp.eq.s32.totalorder %s19, 0
      %p79 = por %p77, %p78
      %p80 = scmp.ne.s32.totalorder %s66, %s67
      %p81 = scmp.eq.s32.totalorder %s20, 3
      %p82 = por %p80, %p81
      %p84 = scmp.ne.s32.totalorder %s67, %s83
      %p85 = scmp.eq.s32.totalorder %s20, 0
      %p86 = por %p84, %p85
      %s87 = smul.u32 %s22, %s21
      %s88 = smul.u32 %s29, %s33
      %s89 = ssub.s32 %s87, %s88
      %p90 = scmp.eq.s32.totalorder %s89, 0
      %s92 = sadd.s32 %s91, 1
      %s93 = scalar_select %p90, %s91, %s92
      %p96 = pneg %p90
      %p97 = scmp.eq.s32.totalorder %s14, 3
      %p98 = por %p96, %p97
      %p99 = scmp.ne.s32.totalorder %s91, %s94
      %p100 = scmp.eq.s32.totalorder %s14, 0
      %p101 = por %p99, %p100
      %p102 = scmp.ne.s32.totalorder %s91, %s94
      %p103 = scmp.eq.s32.totalorder %s19, 3
      %p104 = por %p102, %p103
      %p105 = scmp.ne.s32.totalorder %s94, %s95
      %p106 = scmp.eq.s32.totalorder %s19, 0
      %p107 = por %p105, %p106
      %p108 = scmp.ne.s32.totalorder %s94, %s95
      %p109 = scmp.eq.s32.totalorder %s20, 3
      %p110 = por %p108, %p109
      %p112 = scmp.ne.s32.totalorder %s95, %s111
      %p113 = scmp.eq.s32.totalorder %s20, 0
      %p114 = por %p112, %p113
      %p115 = scmp.le.s32.totalorder 1, %s14
      %p116 = scmp.lt.s32.totalorder %s14, 5
      %p117 = pnand %p115, %p116
      %p118 = pneg %p117
      // Predicated region
      $region9: #{tpu_custom_call.1} parent=5 // pred_check
        _
      $region10: #{tpu_custom_call.1} parent=5 // pred_check_branch
        %120 = sbr.rel (%p117) target = $region12
      $region11: #{tpu_custom_call.1} parent=5 // pred_region
        %s121 = ssub.s32 %s14, 1
        // Predicated region
        $region13: #{tpu_custom_call.1} parent=11 // pred_check
          %p122 = pneg %p47
        $region14: #{tpu_custom_call.1} parent=11 // pred_check_branch
          %124 = sbr.rel (%p122) target = $region16
        $region15: #{tpu_custom_call.1} parent=11 // pred_region
          _
        $region16: #{tpu_custom_call.1} parent=11 // pred_fallthru
          _
      $region12: #{tpu_custom_call.1} parent=5 // pred_fallthru
        _
      %p125 = scmp.lt.s32.totalorder %s14, 4
      // Predicated region
      $region17: #{tpu_custom_call.1} parent=5 // pred_check
        %p126 = pneg %p125
      $region18: #{tpu_custom_call.1} parent=5 // pred_check_branch
        %128 = sbr.rel (%p126) target = $region20
      $region19: #{tpu_custom_call.1} parent=5 // pred_region
        // Predicated region
        $region21: #{tpu_custom_call.1} parent=19 // pred_check
          %p129 = pneg %p73
        $region22: #{tpu_custom_call.1} parent=19 // pred_check_branch
          %131 = sbr.rel (%p129) target = $region24
        $region23: #{tpu_custom_call.1} parent=19 // pred_region
          %s132 = sand.u32 %s63, 1
          %s133 = scalar_lea.sflag [#allocation7], %s132
          %s134 = sand.u32 %s63, 1
          %s135 = smul.addr %s134, 64
          %s136 = scalar_lea.vmem [#allocation6], %s135
          %s137 = ssub.s32 1, %s21
          %s138 = smul.u32 %s22, %s137
          %s139 = sadd.s32 %s138, %s21
          %s140 = smul.u32 4, %s139
          %142 = vsyncadd %s133, 0
          %s143 = smul.addr %s140, 4
          %s144 = scalar_lea.hbm %s1, %s143
          %s145 = sshll.u32 %s144, 4
          %s146 = int_to_ptr.hbm [resolvable:$true] %s145
          %s147 = sshll.u32 %s136, 4
          %s148 = int_to_ptr.vmem [resolvable:$true] %s147
          %153 = dma.hbm_to_vmem [thread:$0]  %s146, 1024, %s148, %s133, 512, 256, 16
        $region24: #{tpu_custom_call.1} parent=19 // pred_fallthru
          _
      $region20: #{tpu_custom_call.1} parent=5 // pred_fallthru
        _
      %p154 = scmp.le.s32.totalorder 1, %s14
      %p155 = scmp.lt.s32.totalorder %s14, 5
      %p156 = pnand %p154, %p155
      %p157 = pneg %p156
      // Predicated region
      $region25: #{tpu_custom_call.1} parent=5 // pred_check
        _
      $region26: #{tpu_custom_call.1} parent=5 // pred_check_branch
        %159 = sbr.rel (%p156) target = $region28
      $region27: #{tpu_custom_call.1} parent=5 // pred_region
        %s160 = ssub.s32 %s14, 1
        %s161 = sand.u32 %s66, 1
        %s162 = scalar_lea.sflag [#allocation7], %s161
        %s163 = sand.u32 %s66, 1
        %s164 = smul.addr %s163, 64
        %s165 = scalar_lea.vmem [#allocation6], %s164
        // Predicated region
        $region29: #{tpu_custom_call.1} parent=27 // pred_check
          %p166 = pneg %p79
        $region30: #{tpu_custom_call.1} parent=27 // pred_check_branch
          %168 = sbr.rel (%p166) target = $region32
        $region31: #{tpu_custom_call.1} parent=27 // pred_region
          %170 = dma.done %s162, 1024
        $region32: #{tpu_custom_call.1} parent=27 // pred_fallthru
          _
        %p171 = pneg %p47
        %p172 = pneg %p44
        %s173 = sand.u32 %s66, 1
        %s174 = scalar_lea.sflag [#allocation7], %s173
        %s175 = sand.u32 %s66, 1
        %s176 = smul.addr %s175, 64
        %s177 = scalar_lea.vmem [#allocation6], %s176
        %p178 = pneg %p79
        %p179 = pneg %p76
        %p180 = pneg %p107
        %p181 = pneg %p104
        %s182 = sand.u32 %s94, 1
        %s183 = scalar_lea.sflag [#allocation8], %s182
        %s184 = sand.u32 %s94, 1
        %s185 = smul.addr %s184, 128
        %s186 = scalar_lea.vmem [#allocation9], %s185
        %s187 = ssub.s32 1, %s23
        %s188 = smul.u32 %s24, %s187
        %s189 = sadd.s32 %s188, %s23
        %s190 = smul.u32 4, %s189
        %s191 = smul.u32 %s24, %s23
        %s192 = smul.u32 4, %s191
        %p194 = scmp.eq.s32.totalorder %s23, 0
        %p195 = scmp.eq.s32.totalorder %s24, 0
        %p196 = pnand %p194, %p195
        %p197 = pneg %p196
        // Predicated region
        $region33: #{tpu_custom_call.1} parent=27 // pred_check
          _
        $region34: #{tpu_custom_call.1} parent=27 // pred_check_branch
          %199 = sbr.rel (%p196) target = $region36
        $region35: #{tpu_custom_call.1} parent=27 // pred_region
          %vm200 = vcmask 7168
          %201 = vst.msk [vmem:[#allocation2] sm:$0xff] %vm200, -inf
          %202 = vst.msk [vmem:[#allocation2 + $0x8] sm:$0xff] %vm200, -inf
          %203 = vst.msk [vmem:[#allocation2 + $0x10] sm:$0xff] %vm200, -inf
          %204 = vst.msk [vmem:[#allocation2 + $0x18] sm:$0xff] %vm200, -inf
          %205 = vst.msk [vmem:[#allocation2 + $0x20] sm:$0xff] %vm200, -inf
          %206 = vst.msk [vmem:[#allocation2 + $0x28] sm:$0xff] %vm200, -inf
          %207 = vst.msk [vmem:[#allocation2 + $0x30] sm:$0xff] %vm200, -inf
          %208 = vst.msk [vmem:[#allocation2 + $0x38] sm:$0xff] %vm200, -inf
          %209 = vst.msk [vmem:[#allocation3] sm:$0xff] %vm200, 0.0
          %210 = vst.msk [vmem:[#allocation3 + $0x8] sm:$0xff] %vm200, 0.0
          %211 = vst.msk [vmem:[#allocation3 + $0x10] sm:$0xff] %vm200, 0.0
          %212 = vst.msk [vmem:[#allocation3 + $0x18] sm:$0xff] %vm200, 0.0
          %213 = vst.msk [vmem:[#allocation3 + $0x20] sm:$0xff] %vm200, 0.0
          %214 = vst.msk [vmem:[#allocation3 + $0x28] sm:$0xff] %vm200, 0.0
          %215 = vst.msk [vmem:[#allocation3 + $0x30] sm:$0xff] %vm200, 0.0
          %216 = vst.msk [vmem:[#allocation3 + $0x38] sm:$0xff] %vm200, 0.0
        $region36: #{tpu_custom_call.1} parent=27 // pred_fallthru
          _
        // Predicated region
        $region37: #{tpu_custom_call.1} parent=27 // pred_check
          %p217 = pneg %p194
        $region38: #{tpu_custom_call.1} parent=27 // pred_check_branch
          %219 = sbr.rel (%p217) target = $region40
        $region39: #{tpu_custom_call.1} parent=27 // pred_region
          %v220 = vld [vmem:[%s0] sm:$0xf]
          %v221 = vld [vmem:[%s0 + $0x4] sm:$0xf]
          %v222 = vld [vmem:[%s0 + $0x8] sm:$0xf]
          %v223 = vld [vmem:[%s0 + $0xc] sm:$0xf]
          %v224 = vld [vmem:[%s0 + $0x10] sm:$0xf]
          %v225 = vld [vmem:[%s0 + $0x14] sm:$0xf]
          %v226 = vld [vmem:[%s0 + $0x18] sm:$0xf]
          %v227 = vld [vmem:[%s0 + $0x1c] sm:$0xf]
          %v228 = vld [vmem:[%s165] sm:$0xff]
          %v229 = vld [vmem:[%s165 + $0x8] sm:$0xff]
          %v230 = vld [vmem:[%s165 + $0x10] sm:$0xff]
          %v231 = vld [vmem:[%s165 + $0x18] sm:$0xff]
          %v232 = vld [vmem:[%s165 + $0x20] sm:$0xff]
          %v233 = vld [vmem:[%s165 + $0x28] sm:$0xff]
          %v234 = vld [vmem:[%s165 + $0x30] sm:$0xff]
          %v235 = vld [vmem:[%s165 + $0x38] sm:$0xff]
          %v244 = vunpack.c.l.b16 %v220
          %v245 = vunpack.c.l.b16 %v221
          %v246 = vunpack.c.l.b16 %v222
          %v247 = vunpack.c.l.b16 %v223
          %v248 = vunpack.c.l.b16 %v224
          %v249 = vunpack.c.l.b16 %v225
          %v250 = vunpack.c.l.b16 %v226
          %v251 = vunpack.c.l.b16 %v227
          %v252 = vpack.c.b16 %v245, %v244
          %v253 = vpack.c.b16 %v247, %v246
          %v254 = vpack.c.b16 %v249, %v248
          %v255 = vpack.c.b16 %v251, %v250
          %v264 = vunpack.c.l.b16 %v228
          %v265 = vunpack.c.h.b16 %v228
          %v266 = vunpack.c.l.b16 %v229
          %v267 = vunpack.c.h.b16 %v229
          %v268 = vunpack.c.l.b16 %v230
          %v269 = vunpack.c.h.b16 %v230
          %v270 = vunpack.c.l.b16 %v231
          %v271 = vunpack.c.h.b16 %v231
          %v272 = vunpack.c.l.b16 %v232
          %v273 = vunpack.c.h.b16 %v232
          %v274 = vunpack.c.l.b16 %v233
          %v275 = vunpack.c.h.b16 %v233
          %v276 = vunpack.c.l.b16 %v234
          %v277 = vunpack.c.h.b16 %v234
          %v278 = vunpack.c.l.b16 %v235
          %v279 = vunpack.c.h.b16 %v235
          %v280 = vpack.c.b16 %v268, %v264
          %v281 = vpack.c.b16 %v269, %v265
          %v282 = vpack.c.b16 %v270, %v266
          %v283 = vpack.c.b16 %v271, %v267
          %v284 = vpack.c.b16 %v276, %v272
          %v285 = vpack.c.b16 %v277, %v273
          %v286 = vpack.c.b16 %v278, %v274
          %v287 = vpack.c.b16 %v279, %v275
          %vm296 = vcmask 261120
          %v298 = vsel %vm296, %v252, 0
          %v301 = vsel %vm296, %v253, 0
          %v304 = vsel %vm296, %v254, 0
          %v307 = vsel %vm296, %v255, 0
          %309 = vmatpush.bf16.msra.mxu0 0
          %310 = vmatpush.bf16.msra.mxu0 0
          %311 = vmatpush.bf16.msra.mxu0 0
          %312 = vmatpush.bf16.msra.mxu0 0
          %313 = vmatpush.bf16.msra.mxu0 0
          %314 = vmatpush.bf16.msra.mxu0 0
          %315 = vmatpush.bf16.msra.mxu0 %v284
          %316 = vmatpush.bf16.msra.mxu0 %v280
          %317 = vmatmul.bf16.gmra.mxu0 %v298
          %v318 = vpop.f32.mrf.mxu0
          %v319 = vadd.f32 0.0, %v318
          %v320 = vpop.f32.mrf.mxu0
          %v321 = vadd.f32 0.0, %v320
          %322 = vmatmul.bf16.gmra.mxu0 %v301
          %v323 = vpop.f32.mrf.mxu0
          %v324 = vadd.f32 0.0, %v323
          %v325 = vpop.f32.mrf.mxu0
          %v326 = vadd.f32 0.0, %v325
          %327 = vmatmul.bf16.gmra.mxu0 %v304
          %v328 = vpop.f32.mrf.mxu0
          %v329 = vadd.f32 0.0, %v328
          %v330 = vpop.f32.mrf.mxu0
          %v331 = vadd.f32 0.0, %v330
          %332 = vmatmul.bf16.gmra.mxu0 %v307
          %v333 = vpop.f32.mrf.mxu0
          %v334 = vadd.f32 0.0, %v333
          %v335 = vpop.f32.mrf.mxu0
          %v336 = vadd.f32 0.0, %v335
          %337 = vdwg.mxu0
          %338 = vmatpush.bf16.msra.mxu0 0
          %339 = vmatpush.bf16.msra.mxu0 0
          %340 = vmatpush.bf16.msra.mxu0 0
          %341 = vmatpush.bf16.msra.mxu0 0
          %342 = vmatpush.bf16.msra.mxu0 0
          %343 = vmatpush.bf16.msra.mxu0 0
          %344 = vmatpush.bf16.msra.mxu0 %v285
          %345 = vmatpush.bf16.msra.mxu0 %v281
          %346 = vmatmul.bf16.gmra.mxu0 %v298
          %v347 = vpop.f32.mrf.mxu0
          %v348 = vadd.f32 0.0, %v347
          %v349 = vpop.f32.mrf.mxu0
          %v350 = vadd.f32 0.0, %v349
          %351 = vmatmul.bf16.gmra.mxu0 %v301
          %v352 = vpop.f32.mrf.mxu0
          %v353 = vadd.f32 0.0, %v352
          %v354 = vpop.f32.mrf.mxu0
          %v355 = vadd.f32 0.0, %v354
          %356 = vmatmul.bf16.gmra.mxu0 %v304
          %v357 = vpop.f32.mrf.mxu0
          %v358 = vadd.f32 0.0, %v357
          %v359 = vpop.f32.mrf.mxu0
          %v360 = vadd.f32 0.0, %v359
          %361 = vmatmul.bf16.gmra.mxu0 %v307
          %v362 = vpop.f32.mrf.mxu0
          %v363 = vadd.f32 0.0, %v362
          %v364 = vpop.f32.mrf.mxu0
          %v365 = vadd.f32 0.0, %v364
          %366 = vdwg.mxu0
          %367 = vmatpush.bf16.msra.mxu0 0
          %368 = vmatpush.bf16.msra.mxu0 0
          %369 = vmatpush.bf16.msra.mxu0 0
          %370 = vmatpush.bf16.msra.mxu0 0
          %371 = vmatpush.bf16.msra.mxu0 0
          %372 = vmatpush.bf16.msra.mxu0 0
          %373 = vmatpush.bf16.msra.mxu0 %v286
          %374 = vmatpush.bf16.msra.mxu0 %v282
          %375 = vmatmul.bf16.gmra.mxu0 %v298
          %v376 = vpop.f32.mrf.mxu0
          %v377 = vadd.f32 0.0, %v376
          %v378 = vpop.f32.mrf.mxu0
          %v379 = vadd.f32 0.0, %v378
          %380 = vmatmul.bf16.gmra.mxu0 %v301
          %v381 = vpop.f32.mrf.mxu0
          %v382 = vadd.f32 0.0, %v381
          %v383 = vpop.f32.mrf.mxu0
          %v384 = vadd.f32 0.0, %v383
          %385 = vmatmul.bf16.gmra.mxu0 %v304
          %v386 = vpop.f32.mrf.mxu0
          %v387 = vadd.f32 0.0, %v386
          %v388 = vpop.f32.mrf.mxu0
          %v389 = vadd.f32 0.0, %v388
          %390 = vmatmul.bf16.gmra.mxu0 %v307
          %v391 = vpop.f32.mrf.mxu0
          %v392 = vadd.f32 0.0, %v391
          %v393 = vpop.f32.mrf.mxu0
          %v394 = vadd.f32 0.0, %v393
          %395 = vdwg.mxu0
          %396 = vmatpush.bf16.msra.mxu0 0
          %397 = vmatpush.bf16.msra.mxu0 0
          %398 = vmatpush.bf16.msra.mxu0 0
          %399 = vmatpush.bf16.msra.mxu0 0
          %400 = vmatpush.bf16.msra.mxu0 0
          %401 = vmatpush.bf16.msra.mxu0 0
          %402 = vmatpush.bf16.msra.mxu0 %v287
          %403 = vmatpush.bf16.msra.mxu0 %v283
          %404 = vmatmul.bf16.gmra.mxu0 %v298
          %v405 = vpop.f32.mrf.mxu0
          %v406 = vadd.f32 0.0, %v405
          %v407 = vpop.f32.mrf.mxu0
          %v408 = vadd.f32 0.0, %v407
          %409 = vmatmul.bf16.gmra.mxu0 %v301
          %v410 = vpop.f32.mrf.mxu0
          %v411 = vadd.f32 0.0, %v410
          %v412 = vpop.f32.mrf.mxu0
          %v413 = vadd.f32 0.0, %v412
          %414 = vmatmul.bf16.gmra.mxu0 %v304
          %v415 = vpop.f32.mrf.mxu0
          %v416 = vadd.f32 0.0, %v415
          %v417 = vpop.f32.mrf.mxu0
          %v418 = vadd.f32 0.0, %v417
          %419 = vmatmul.bf16.gmra.mxu0 %v307
          %v420 = vpop.f32.mrf.mxu0
          %v421 = vadd.f32 0.0, %v420
          %v422 = vpop.f32.mrf.mxu0
          %v423 = vadd.f32 0.0, %v422
          %424 = vdwg.mxu0
          %v425 = vadd.f32 %v319, %v321
          %v426 = vadd.f32 %v425, %v324
          %v427 = vadd.f32 %v426, %v326
          %v428 = vadd.f32 %v427, %v329
          %v429 = vadd.f32 %v428, %v331
          %v430 = vadd.f32 %v429, %v334
          %v431 = vadd.f32 %v430, %v336
          %v432 = vrot.slane %v431, 4
          %v433 = vadd.f32 %v431, %v432
          %v434 = vrot.slane %v433, 2
          %v435 = vadd.f32 %v433, %v434
          %v436 = vrot.slane %v435, 1
          %v437 = vadd.f32 %v435, %v436
          %v438 = vadd.f32 %v348, %v350
          %v439 = vadd.f32 %v438, %v353
          %v440 = vadd.f32 %v439, %v355
          %v441 = vadd.f32 %v440, %v358
          %v442 = vadd.f32 %v441, %v360
          %v443 = vadd.f32 %v442, %v363
          %v444 = vadd.f32 %v443, %v365
          %v445 = vrot.slane %v444, 4
          %v446 = vadd.f32 %v444, %v445
          %v447 = vrot.slane %v446, 2
          %v448 = vadd.f32 %v446, %v447
          %v449 = vrot.slane %v448, 1
          %v450 = vadd.f32 %v448, %v449
          %v451 = vadd.f32 %v377, %v379
          %v452 = vadd.f32 %v451, %v382
          %v453 = vadd.f32 %v452, %v384
          %v454 = vadd.f32 %v453, %v387
          %v455 = vadd.f32 %v454, %v389
          %v456 = vadd.f32 %v455, %v392
          %v457 = vadd.f32 %v456, %v394
          %v458 = vrot.slane %v457, 4
          %v459 = vadd.f32 %v457, %v458
          %v460 = vrot.slane %v459, 2
          %v461 = vadd.f32 %v459, %v460
          %v462 = vrot.slane %v461, 1
          %v463 = vadd.f32 %v461, %v462
          %v464 = vadd.f32 %v406, %v408
          %v465 = vadd.f32 %v464, %v411
          %v466 = vadd.f32 %v465, %v413
          %v467 = vadd.f32 %v466, %v416
          %v468 = vadd.f32 %v467, %v418
          %v469 = vadd.f32 %v468, %v421
          %v470 = vadd.f32 %v469, %v423
          %v471 = vrot.slane %v470, 4
          %v472 = vadd.f32 %v470, %v471
          %v473 = vrot.slane %v472, 2
          %v474 = vadd.f32 %v472, %v473
          %v475 = vrot.slane %v474, 1
          %v476 = vadd.f32 %v474, %v475
          %v477 = vrcp.pop 64.0
          %v478 = vmul.f32 64.0, %v477
          %v479 = vsub.f32 1.0, %v478
          %v480 = vmul.f32 %v477, %v479
          %v481 = vadd.f32 %v477, %v480
          %vm482 = vweird.f32 %v477
          %v483 = vsel %vm482, %v477, %v481
          %v484 = vmul.f32 %v437, %v483
          %v485 = vmul.f32 %v450, %v483
          %v486 = vmul.f32 %v463, %v483
          %v487 = vmul.f32 %v476, %v483
          %v488 = vsub.f32 %v319, %v484
          %v489 = vsub.f32 %v348, %v485
          %v490 = vsub.f32 %v377, %v486
          %v491 = vsub.f32 %v406, %v487
          %v492 = vsub.f32 %v321, %v484
          %v493 = vsub.f32 %v350, %v485
          %v494 = vsub.f32 %v379, %v486
          %v495 = vsub.f32 %v408, %v487
          %v496 = vsub.f32 %v324, %v484
          %v497 = vsub.f32 %v353, %v485
          %v498 = vsub.f32 %v382, %v486
          %v499 = vsub.f32 %v411, %v487
          %v500 = vsub.f32 %v326, %v484
          %v501 = vsub.f32 %v355, %v485
          %v502 = vsub.f32 %v384, %v486
          %v503 = vsub.f32 %v413, %v487
          %v504 = vsub.f32 %v329, %v484
          %v505 = vsub.f32 %v358, %v485
          %v506 = vsub.f32 %v387, %v486
          %v507 = vsub.f32 %v416, %v487
          %v508 = vsub.f32 %v331, %v484
          %v509 = vsub.f32 %v360, %v485
          %v510 = vsub.f32 %v389, %v486
          %v511 = vsub.f32 %v418, %v487
          %v512 = vsub.f32 %v334, %v484
          %v513 = vsub.f32 %v363, %v485
          %v514 = vsub.f32 %v392, %v486
          %v515 = vsub.f32 %v421, %v487
          %v516 = vsub.f32 %v336, %v484
          %v517 = vsub.f32 %v365, %v485
          %v518 = vsub.f32 %v394, %v486
          %v519 = vsub.f32 %v423, %v487
          %v520 = vmul.f32 %v488, %v488
          %v521 = vmul.f32 %v489, %v489
          %v522 = vmul.f32 %v490, %v490
          %v523 = vmul.f32 %v491, %v491
          %v524 = vmul.f32 %v492, %v492
          %v525 = vmul.f32 %v493, %v493
          %v526 = vmul.f32 %v494, %v494
          %v527 = vmul.f32 %v495, %v495
          %v528 = vmul.f32 %v496, %v496
          %v529 = vmul.f32 %v497, %v497
          %v530 = vmul.f32 %v498, %v498
          %v531 = vmul.f32 %v499, %v499
          %v532 = vmul.f32 %v500, %v500
          %v533 = vmul.f32 %v501, %v501
          %v534 = vmul.f32 %v502, %v502
          %v535 = vmul.f32 %v503, %v503
          %v536 = vmul.f32 %v504, %v504
          %v537 = vmul.f32 %v505, %v505
          %v538 = vmul.f32 %v506, %v506
          %v539 = vmul.f32 %v507, %v507
          %v540 = vmul.f32 %v508, %v508
          %v541 = vmul.f32 %v509, %v509
          %v542 = vmul.f32 %v510, %v510
          %v543 = vmul.f32 %v511, %v511
          %v544 = vmul.f32 %v512, %v512
          %v545 = vmul.f32 %v513, %v513
          %v546 = vmul.f32 %v514, %v514
          %v547 = vmul.f32 %v515, %v515
          %v548 = vmul.f32 %v516, %v516
          %v549 = vmul.f32 %v517, %v517
          %v550 = vmul.f32 %v518, %v518
          %v551 = vmul.f32 %v519, %v519
          %v552 = vadd.f32 %v520, %v524
          %v553 = vadd.f32 %v552, %v528
          %v554 = vadd.f32 %v553, %v532
          %v555 = vadd.f32 %v554, %v536
          %v556 = vadd.f32 %v555, %v540
          %v557 = vadd.f32 %v556, %v544
          %v558 = vadd.f32 %v557, %v548
          %v559 = vrot.slane %v558, 4
          %v560 = vadd.f32 %v558, %v559
          %v561 = vrot.slane %v560, 2
          %v562 = vadd.f32 %v560, %v561
          %v563 = vrot.slane %v562, 1
          %v564 = vadd.f32 %v562, %v563
          %v565 = vadd.f32 %v521, %v525
          %v566 = vadd.f32 %v565, %v529
          %v567 = vadd.f32 %v566, %v533
          %v568 = vadd.f32 %v567, %v537
          %v569 = vadd.f32 %v568, %v541
          %v570 = vadd.f32 %v569, %v545
          %v571 = vadd.f32 %v570, %v549
          %v572 = vrot.slane %v571, 4
          %v573 = vadd.f32 %v571, %v572
          %v574 = vrot.slane %v573, 2
          %v575 = vadd.f32 %v573, %v574
          %v576 = vrot.slane %v575, 1
          %v577 = vadd.f32 %v575, %v576
          %v578 = vadd.f32 %v522, %v526
          %v579 = vadd.f32 %v578, %v530
          %v580 = vadd.f32 %v579, %v534
          %v581 = vadd.f32 %v580, %v538
          %v582 = vadd.f32 %v581, %v542
          %v583 = vadd.f32 %v582, %v546
          %v584 = vadd.f32 %v583, %v550
          %v585 = vrot.slane %v584, 4
          %v586 = vadd.f32 %v584, %v585
          %v587 = vrot.slane %v586, 2
          %v588 = vadd.f32 %v586, %v587
          %v589 = vrot.slane %v588, 1
          %v590 = vadd.f32 %v588, %v589
          %v591 = vadd.f32 %v523, %v527
          %v592 = vadd.f32 %v591, %v531
          %v593 = vadd.f32 %v592, %v535
          %v594 = vadd.f32 %v593, %v539
          %v595 = vadd.f32 %v594, %v543
          %v596 = vadd.f32 %v595, %v547
          %v597 = vadd.f32 %v596, %v551
          %v598 = vrot.slane %v597, 4
          %v599 = vadd.f32 %v597, %v598
          %v600 = vrot.slane %v599, 2
          %v601 = vadd.f32 %v599, %v600
          %v602 = vrot.slane %v601, 1
          %v603 = vadd.f32 %v601, %v602
          %v604 = vmul.f32 %v564, %v483
          %v605 = vmul.f32 %v577, %v483
          %v606 = vmul.f32 %v590, %v483
          %v607 = vmul.f32 %v603, %v483
          %v608 = vadd.f32 %v604, 1e-05
          %v609 = vadd.f32 %v605, 1e-05
          %v610 = vadd.f32 %v606, 1e-05
          %v611 = vadd.f32 %v607, 1e-05
          %v612 = vrsqrt.pop %v608
          %v613 = vmul.f32 %v612, %v608
          %v614 = vmul.f32 %v613, %v612
          %v615 = vmul.f32 0.5, %v614
          %v616 = vsub.f32 1.5, %v615
          %v617 = vmul.f32 %v612, %v616
          %vm618 = vweird.f32 %v608
          %vm619 = vweird.f32 %v612
          %vm620 = vmor %vm618, %vm619
          %v621 = vsel %vm620, %v612, %v617
          %v622 = vrsqrt.pop %v609
          %v623 = vmul.f32 %v622, %v609
          %v624 = vmul.f32 %v623, %v622
          %v625 = vmul.f32 0.5, %v624
          %v626 = vsub.f32 1.5, %v625
          %v627 = vmul.f32 %v622, %v626
          %vm628 = vweird.f32 %v609
          %vm629 = vweird.f32 %v622
          %vm630 = vmor %vm628, %vm629
          %v631 = vsel %vm630, %v622, %v627
          %v632 = vrsqrt.pop %v610
          %v633 = vmul.f32 %v632, %v610
          %v634 = vmul.f32 %v633, %v632
          %v635 = vmul.f32 0.5, %v634
          %v636 = vsub.f32 1.5, %v635
          %v637 = vmul.f32 %v632, %v636
          %vm638 = vweird.f32 %v610
          %vm639 = vweird.f32 %v632
          %vm640 = vmor %vm638, %vm639
          %v641 = vsel %vm640, %v632, %v637
          %v642 = vrsqrt.pop %v611
          %v643 = vmul.f32 %v642, %v611
          %v644 = vmul.f32 %v643, %v642
          %v645 = vmul.f32 0.5, %v644
          %v646 = vsub.f32 1.5, %v645
          %v647 = vmul.f32 %v642, %v646
          %vm648 = vweird.f32 %v611
          %vm649 = vweird.f32 %v642
          %vm650 = vmor %vm648, %vm649
          %v651 = vsel %vm650, %v642, %v647
          %v652 = vmul.f32 %v488, %v621
          %v653 = vmul.f32 %v489, %v631
          %v654 = vmul.f32 %v490, %v641
          %v655 = vmul.f32 %v491, %v651
          %v656 = vmul.f32 %v492, %v621
          %v657 = vmul.f32 %v493, %v631
          %v658 = vmul.f32 %v494, %v641
          %v659 = vmul.f32 %v495, %v651
          %v660 = vmul.f32 %v496, %v621
          %v661 = vmul.f32 %v497, %v631
          %v662 = vmul.f32 %v498, %v641
          %v663 = vmul.f32 %v499, %v651
          %v664 = vmul.f32 %v500, %v621
          %v665 = vmul.f32 %v501, %v631
          %v666 = vmul.f32 %v502, %v641
          %v667 = vmul.f32 %v503, %v651
          %v668 = vmul.f32 %v504, %v621
          %v669 = vmul.f32 %v505, %v631
          %v670 = vmul.f32 %v506, %v641
          %v671 = vmul.f32 %v507, %v651
          %v672 = vmul.f32 %v508, %v621
          %v673 = vmul.f32 %v509, %v631
          %v674 = vmul.f32 %v510, %v641
          %v675 = vmul.f32 %v511, %v651
          %v676 = vmul.f32 %v512, %v621
          %v677 = vmul.f32 %v513, %v631
          %v678 = vmul.f32 %v514, %v641
          %v679 = vmul.f32 %v515, %v651
          %v680 = vmul.f32 %v516, %v621
          %v681 = vmul.f32 %v517, %v631
          %v682 = vmul.f32 %v518, %v641
          %v683 = vmul.f32 %v519, %v651
          %v684 = vmax.f32 %v652, %v653
          %v685 = vmax.f32 %v684, %v654
          %v686 = vmax.f32 %v685, %v655
          %687 = vmax.xlane.f32.xlu0 %v686
          %v688 = vpop.xlane.xlu0 %687
          %v689 = vmax.f32 %v656, %v657
          %v690 = vmax.f32 %v689, %v658
          %v691 = vmax.f32 %v690, %v659
          %692 = vmax.xlane.f32.xlu0 %v691
          %v693 = vpop.xlane.xlu0 %692
          %v694 = vmax.f32 %v660, %v661
          %v695 = vmax.f32 %v694, %v662
          %v696 = vmax.f32 %v695, %v663
          %697 = vmax.xlane.f32.xlu0 %v696
          %v698 = vpop.xlane.xlu0 %697
          %v699 = vmax.f32 %v664, %v665
          %v700 = vmax.f32 %v699, %v666
          %v701 = vmax.f32 %v700, %v667
          %702 = vmax.xlane.f32.xlu0 %v701
          %v703 = vpop.xlane.xlu0 %702
          %v704 = vmax.f32 %v668, %v669
          %v705 = vmax.f32 %v704, %v670
          %v706 = vmax.f32 %v705, %v671
          %707 = vmax.xlane.f32.xlu0 %v706
          %v708 = vpop.xlane.xlu0 %707
          %v709 = vmax.f32 %v672, %v673
          %v710 = vmax.f32 %v709, %v674
          %v711 = vmax.f32 %v710, %v675
          %712 = vmax.xlane.f32.xlu0 %v711
          %v713 = vpop.xlane.xlu0 %712
          %v714 = vmax.f32 %v676, %v677
          %v715 = vmax.f32 %v714, %v678
          %v716 = vmax.f32 %v715, %v679
          %717 = vmax.xlane.f32.xlu0 %v716
          %v718 = vpop.xlane.xlu0 %717
          %v719 = vmax.f32 %v680, %v681
          %v720 = vmax.f32 %v719, %v682
          %v721 = vmax.f32 %v720, %v683
          %722 = vmax.xlane.f32.xlu0 %v721
          %v723 = vpop.xlane.xlu0 %722
          %v724 = vsub.f32 %v652, %v688
          %v725 = vsub.f32 %v653, %v688
          %v726 = vsub.f32 %v654, %v688
          %v727 = vsub.f32 %v655, %v688
          %v728 = vsub.f32 %v656, %v693
          %v729 = vsub.f32 %v657, %v693
          %v730 = vsub.f32 %v658, %v693
          %v731 = vsub.f32 %v659, %v693
          %v732 = vsub.f32 %v660, %v698
          %v733 = vsub.f32 %v661, %v698
          %v734 = vsub.f32 %v662, %v698
          %v735 = vsub.f32 %v663, %v698
          %v736 = vsub.f32 %v664, %v703
          %v737 = vsub.f32 %v665, %v703
          %v738 = vsub.f32 %v666, %v703
          %v739 = vsub.f32 %v667, %v703
          %v740 = vsub.f32 %v668, %v708
          %v741 = vsub.f32 %v669, %v708
          %v742 = vsub.f32 %v670, %v708
          %v743 = vsub.f32 %v671, %v708
          %v744 = vsub.f32 %v672, %v713
          %v745 = vsub.f32 %v673, %v713
          %v746 = vsub.f32 %v674, %v713
          %v747 = vsub.f32 %v675, %v713
          %v748 = vsub.f32 %v676, %v718
          %v749 = vsub.f32 %v677, %v718
          %v750 = vsub.f32 %v678, %v718
          %v751 = vsub.f32 %v679, %v718
          %v752 = vsub.f32 %v680, %v723
          %v753 = vsub.f32 %v681, %v723
          %v754 = vsub.f32 %v682, %v723
          %v755 = vsub.f32 %v683, %v723
          %v756 = vmul.f32 %v724, 1.442695
          %v757 = vpow.pop %v756
          %v758 = vmul.f32 %v725, 1.442695
          %v759 = vpow.pop %v758
          %v760 = vmul.f32 %v726, 1.442695
          %v761 = vpow.pop %v760
          %v762 = vmul.f32 %v727, 1.442695
          %v763 = vpow.pop %v762
          %v764 = vmul.f32 %v728, 1.442695
          %v765 = vpow.pop %v764
          %v766 = vmul.f32 %v729, 1.442695
          %v767 = vpow.pop %v766
          %v768 = vmul.f32 %v730, 1.442695
          %v769 = vpow.pop %v768
          %v770 = vmul.f32 %v731, 1.442695
          %v771 = vpow.pop %v770
          %v772 = vmul.f32 %v732, 1.442695
          %v773 = vpow.pop %v772
          %v774 = vmul.f32 %v733, 1.442695
          %v775 = vpow.pop %v774
          %v776 = vmul.f32 %v734, 1.442695
          %v777 = vpow.pop %v776
          %v778 = vmul.f32 %v735, 1.442695
          %v779 = vpow.pop %v778
          %v780 = vmul.f32 %v736, 1.442695
          %v781 = vpow.pop %v780
          %v782 = vmul.f32 %v737, 1.442695
          %v783 = vpow.pop %v782
          %v784 = vmul.f32 %v738, 1.442695
          %v785 = vpow.pop %v784
          %v786 = vmul.f32 %v739, 1.442695
          %v787 = vpow.pop %v786
          %v788 = vmul.f32 %v740, 1.442695
          %v789 = vpow.pop %v788
          %v790 = vmul.f32 %v741, 1.442695
          %v791 = vpow.pop %v790
          %v792 = vmul.f32 %v742, 1.442695
          %v793 = vpow.pop %v792
          %v794 = vmul.f32 %v743, 1.442695
          %v795 = vpow.pop %v794
          %v796 = vmul.f32 %v744, 1.442695
          %v797 = vpow.pop %v796
          %v798 = vmul.f32 %v745, 1.442695
          %v799 = vpow.pop %v798
          %v800 = vmul.f32 %v746, 1.442695
          %v801 = vpow.pop %v800
          %v802 = vmul.f32 %v747, 1.442695
          %v803 = vpow.pop %v802
          %v804 = vmul.f32 %v748, 1.442695
          %v805 = vpow.pop %v804
          %v806 = vmul.f32 %v749, 1.442695
          %v807 = vpow.pop %v806
          %v808 = vmul.f32 %v750, 1.442695
          %v809 = vpow.pop %v808
          %v810 = vmul.f32 %v751, 1.442695
          %v811 = vpow.pop %v810
          %v812 = vmul.f32 %v752, 1.442695
          %v813 = vpow.pop %v812
          %v814 = vmul.f32 %v753, 1.442695
          %v815 = vpow.pop %v814
          %v816 = vmul.f32 %v754, 1.442695
          %v817 = vpow.pop %v816
          %v818 = vmul.f32 %v755, 1.442695
          %v819 = vpow.pop %v818
          %v820 = vadd.f32 %v757, %v759
          %v821 = vadd.f32 %v820, %v761
          %v822 = vadd.f32 %v821, %v763
          %823 = vadd.xlane.f32.xlu0 %v822
          %v824 = vpop.xlane.xlu0 %823
          %v825 = vadd.f32 %v765, %v767
          %v826 = vadd.f32 %v825, %v769
          %v827 = vadd.f32 %v826, %v771
          %828 = vadd.xlane.f32.xlu0 %v827
          %v829 = vpop.xlane.xlu0 %828
          %v830 = vadd.f32 %v773, %v775
          %v831 = vadd.f32 %v830, %v777
          %v832 = vadd.f32 %v831, %v779
          %833 = vadd.xlane.f32.xlu0 %v832
          %v834 = vpop.xlane.xlu0 %833
          %v835 = vadd.f32 %v781, %v783
          %v836 = vadd.f32 %v835, %v785
          %v837 = vadd.f32 %v836, %v787
          %838 = vadd.xlane.f32.xlu0 %v837
          %v839 = vpop.xlane.xlu0 %838
          %v840 = vadd.f32 %v789, %v791
          %v841 = vadd.f32 %v840, %v793
          %v842 = vadd.f32 %v841, %v795
          %843 = vadd.xlane.f32.xlu0 %v842
          %v844 = vpop.xlane.xlu0 %843
          %v845 = vadd.f32 %v797, %v799
          %v846 = vadd.f32 %v845, %v801
          %v847 = vadd.f32 %v846, %v803
          %848 = vadd.xlane.f32.xlu0 %v847
          %v849 = vpop.xlane.xlu0 %848
          %v850 = vadd.f32 %v805, %v807
          %v851 = vadd.f32 %v850, %v809
          %v852 = vadd.f32 %v851, %v811
          %853 = vadd.xlane.f32.xlu0 %v852
          %v854 = vpop.xlane.xlu0 %853
          %v855 = vadd.f32 %v813, %v815
          %v856 = vadd.f32 %v855, %v817
          %v857 = vadd.f32 %v856, %v819
          %858 = vadd.xlane.f32.xlu0 %v857
          %v859 = vpop.xlane.xlu0 %858
          %v860 = vld [vmem:[#allocation2] sm:$0xff]
          %v861 = vld [vmem:[#allocation2 + $0x8] sm:$0xff]
          %v862 = vld [vmem:[#allocation2 + $0x10] sm:$0xff]
          %v863 = vld [vmem:[#allocation2 + $0x18] sm:$0xff]
          %v864 = vld [vmem:[#allocation2 + $0x20] sm:$0xff]
          %v865 = vld [vmem:[#allocation2 + $0x28] sm:$0xff]
          %v866 = vld [vmem:[#allocation2 + $0x30] sm:$0xff]
          %v867 = vld [vmem:[#allocation2 + $0x38] sm:$0xff]
          %v868 = vmax.f32 %v860, %v688
          %v869 = vmax.f32 %v861, %v693
          %v870 = vmax.f32 %v862, %v698
          %v871 = vmax.f32 %v863, %v703
          %v872 = vmax.f32 %v864, %v708
          %v873 = vmax.f32 %v865, %v713
          %v874 = vmax.f32 %v866, %v718
          %v875 = vmax.f32 %v867, %v723
          %v876 = vld [vmem:[#allocation3] sm:$0xff]
          %v877 = vld [vmem:[#allocation3 + $0x8] sm:$0xff]
          %v878 = vld [vmem:[#allocation3 + $0x10] sm:$0xff]
          %v879 = vld [vmem:[#allocation3 + $0x18] sm:$0xff]
          %v880 = vld [vmem:[#allocation3 + $0x20] sm:$0xff]
          %v881 = vld [vmem:[#allocation3 + $0x28] sm:$0xff]
          %v882 = vld [vmem:[#allocation3 + $0x30] sm:$0xff]
          %v883 = vld [vmem:[#allocation3 + $0x38] sm:$0xff]
          %v884 = vsub.f32 %v860, %v868
          %v885 = vsub.f32 %v861, %v869
          %v886 = vsub.f32 %v862, %v870
          %v887 = vsub.f32 %v863, %v871
          %v888 = vsub.f32 %v864, %v872
          %v889 = vsub.f32 %v865, %v873
          %v890 = vsub.f32 %v866, %v874
          %v891 = vsub.f32 %v867, %v875
          %v892 = vmul.f32 %v884, 1.442695
          %v893 = vpow.pop %v892
          %v894 = vmul.f32 %v885, 1.442695
          %v895 = vpow.pop %v894
          %v896 = vmul.f32 %v886, 1.442695
          %v897 = vpow.pop %v896
          %v898 = vmul.f32 %v887, 1.442695
          %v899 = vpow.pop %v898
          %v900 = vmul.f32 %v888, 1.442695
          %v901 = vpow.pop %v900
          %v902 = vmul.f32 %v889, 1.442695
          %v903 = vpow.pop %v902
          %v904 = vmul.f32 %v890, 1.442695
          %v905 = vpow.pop %v904
          %v906 = vmul.f32 %v891, 1.442695
          %v907 = vpow.pop %v906
          %v908 = vmul.f32 %v876, %v893
          %v909 = vmul.f32 %v877, %v895
          %v910 = vmul.f32 %v878, %v897
          %v911 = vmul.f32 %v879, %v899
          %v912 = vmul.f32 %v880, %v901
          %v913 = vmul.f32 %v881, %v903
          %v914 = vmul.f32 %v882, %v905
          %v915 = vmul.f32 %v883, %v907
          %v916 = vsub.f32 %v688, %v868
          %v917 = vsub.f32 %v693, %v869
          %v918 = vsub.f32 %v698, %v870
          %v919 = vsub.f32 %v703, %v871
          %v920 = vsub.f32 %v708, %v872
          %v921 = vsub.f32 %v713, %v873
          %v922 = vsub.f32 %v718, %v874
          %v923 = vsub.f32 %v723, %v875
          %v924 = vmul.f32 %v916, 1.442695
          %v925 = vpow.pop %v924
          %v926 = vmul.f32 %v917, 1.442695
          %v927 = vpow.pop %v926
          %v928 = vmul.f32 %v918, 1.442695
          %v929 = vpow.pop %v928
          %v930 = vmul.f32 %v919, 1.442695
          %v931 = vpow.pop %v930
          %v932 = vmul.f32 %v920, 1.442695
          %v933 = vpow.pop %v932
          %v934 = vmul.f32 %v921, 1.442695
          %v935 = vpow.pop %v934
          %v936 = vmul.f32 %v922, 1.442695
          %v937 = vpow.pop %v936
          %v938 = vmul.f32 %v923, 1.442695
          %v939 = vpow.pop %v938
          %v940 = vmul.f32 %v824, %v925
          %v941 = vmul.f32 %v829, %v927
          %v942 = vmul.f32 %v834, %v929
          %v943 = vmul.f32 %v839, %v931
          %v944 = vmul.f32 %v844, %v933
          %v945 = vmul.f32 %v849, %v935
          %v946 = vmul.f32 %v854, %v937
          %v947 = vmul.f32 %v859, %v939
          %v948 = vadd.f32 %v908, %v940
          %v949 = vadd.f32 %v909, %v941
          %v950 = vadd.f32 %v910, %v942
          %v951 = vadd.f32 %v911, %v943
          %v952 = vadd.f32 %v912, %v944
          %v953 = vadd.f32 %v913, %v945
          %v954 = vadd.f32 %v914, %v946
          %v955 = vadd.f32 %v915, %v947
          %vm956 = vcmask 7168
          %957 = vst.msk [vmem:[#allocation3] sm:$0xff] %vm956, %v948
          %958 = vst.msk [vmem:[#allocation3 + $0x8] sm:$0xff] %vm956, %v949
          %959 = vst.msk [vmem:[#allocation3 + $0x10] sm:$0xff] %vm956, %v950
          %960 = vst.msk [vmem:[#allocation3 + $0x18] sm:$0xff] %vm956, %v951
          %961 = vst.msk [vmem:[#allocation3 + $0x20] sm:$0xff] %vm956, %v952
          %962 = vst.msk [vmem:[#allocation3 + $0x28] sm:$0xff] %vm956, %v953
          %963 = vst.msk [vmem:[#allocation3 + $0x30] sm:$0xff] %vm956, %v954
          %964 = vst.msk [vmem:[#allocation3 + $0x38] sm:$0xff] %vm956, %v955
          %965 = vst.msk [vmem:[#allocation2] sm:$0xff] %vm956, %v868
          %966 = vst.msk [vmem:[#allocation2 + $0x8] sm:$0xff] %vm956, %v869
          %967 = vst.msk [vmem:[#allocation2 + $0x10] sm:$0xff] %vm956, %v870
          %968 = vst.msk [vmem:[#allocation2 + $0x18] sm:$0xff] %vm956, %v871
          %969 = vst.msk [vmem:[#allocation2 + $0x20] sm:$0xff] %vm956, %v872
          %970 = vst.msk [vmem:[#allocation2 + $0x28] sm:$0xff] %vm956, %v873
          %971 = vst.msk [vmem:[#allocation2 + $0x30] sm:$0xff] %vm956, %v874
          %972 = vst.msk [vmem:[#allocation2 + $0x38] sm:$0xff] %vm956, %v875
          %s973 = smul.u32 %s24, 64
          %s974 = scalar_lea.vmem [#allocation4], %s973
          %975 = vst.msk [vmem:[%s974] sm:$0xff] %vm956, %v688
          %976 = vst.msk [vmem:[%s974 + $0x8] sm:$0xff] %vm956, %v693
          %977 = vst.msk [vmem:[%s974 + $0x10] sm:$0xff] %vm956, %v698
          %978 = vst.msk [vmem:[%s974 + $0x18] sm:$0xff] %vm956, %v703
          %979 = vst.msk [vmem:[%s974 + $0x20] sm:$0xff] %vm956, %v708
          %980 = vst.msk [vmem:[%s974 + $0x28] sm:$0xff] %vm956, %v713
          %981 = vst.msk [vmem:[%s974 + $0x30] sm:$0xff] %vm956, %v718
          %982 = vst.msk [vmem:[%s974 + $0x38] sm:$0xff] %vm956, %v723
          %v983 = vpack.c.bf16 %v759, %v757
          %v984 = vpack.c.bf16 %v763, %v761
          %v985 = vpack.c.bf16 %v767, %v765
          %v986 = vpack.c.bf16 %v771, %v769
          %v987 = vpack.c.bf16 %v775, %v773
          %v988 = vpack.c.bf16 %v779, %v777
          %v989 = vpack.c.bf16 %v783, %v781
          %v990 = vpack.c.bf16 %v787, %v785
          %v991 = vpack.c.bf16 %v791, %v789
          %v992 = vpack.c.bf16 %v795, %v793
          %v993 = vpack.c.bf16 %v799, %v797
          %v994 = vpack.c.bf16 %v803, %v801
          %v995 = vpack.c.bf16 %v807, %v805
          %v996 = vpack.c.bf16 %v811, %v809
          %v997 = vpack.c.bf16 %v815, %v813
          %v998 = vpack.c.bf16 %v819, %v817
          %s999 = smul.u32 %s24, 32
          %s1000 = smul.addr %s999, 4
          %s1001 = scalar_lea.vmem [#allocation5], %s1000
          %1002 = vst [vmem:[%s1001] sm:$0xff] %v983
          %1003 = vst [vmem:[%s1001 + $0x8] sm:$0xff] %v984
          %1004 = vst [vmem:[%s1001 + $0x10] sm:$0xff] %v985
          %1005 = vst [vmem:[%s1001 + $0x18] sm:$0xff] %v986
          %1006 = vst [vmem:[%s1001 + $0x20] sm:$0xff] %v987
          %1007 = vst [vmem:[%s1001 + $0x28] sm:$0xff] %v988
          %1008 = vst [vmem:[%s1001 + $0x30] sm:$0xff] %v989
          %1009 = vst [vmem:[%s1001 + $0x38] sm:$0xff] %v990
          %1010 = vst [vmem:[%s1001 + $0x40] sm:$0xff] %v991
          %1011 = vst [vmem:[%s1001 + $0x48] sm:$0xff] %v992
          %1012 = vst [vmem:[%s1001 + $0x50] sm:$0xff] %v993
          %1013 = vst [vmem:[%s1001 + $0x58] sm:$0xff] %v994
          %1014 = vst [vmem:[%s1001 + $0x60] sm:$0xff] %v995
          %1015 = vst [vmem:[%s1001 + $0x68] sm:$0xff] %v996
          %1016 = vst [vmem:[%s1001 + $0x70] sm:$0xff] %v997
          %1017 = vst [vmem:[%s1001 + $0x78] sm:$0xff] %v998
        $region40: #{tpu_custom_call.1} parent=27 // pred_fallthru
          _
        %p1018 = scmp.eq.s32.totalorder %s23, 1
        // Predicated region
        $region41: #{tpu_custom_call.1} parent=27 // pred_check
          %p1019 = pneg %p1018
        $region42: #{tpu_custom_call.1} parent=27 // pred_check_branch
          %1021 = sbr.rel (%p1019) target = $region44
        $region43: #{tpu_custom_call.1} parent=27 // pred_region
          %s1022 = smul.u32 %s24, 64
          %s1023 = scalar_lea.vmem [#allocation4], %s1022
          %v1024 = vld [vmem:[%s1023] sm:$0xff]
          %v1025 = vld [vmem:[%s1023 + $0x8] sm:$0xff]
          %v1026 = vld [vmem:[%s1023 + $0x10] sm:$0xff]
          %v1027 = vld [vmem:[%s1023 + $0x18] sm:$0xff]
          %v1028 = vld [vmem:[%s1023 + $0x20] sm:$0xff]
          %v1029 = vld [vmem:[%s1023 + $0x28] sm:$0xff]
          %v1030 = vld [vmem:[%s1023 + $0x30] sm:$0xff]
          %v1031 = vld [vmem:[%s1023 + $0x38] sm:$0xff]
          %v1032 = vld [vmem:[#allocation2] sm:$0xff]
          %v1033 = vld [vmem:[#allocation2 + $0x8] sm:$0xff]
          %v1034 = vld [vmem:[#allocation2 + $0x10] sm:$0xff]
          %v1035 = vld [vmem:[#allocation2 + $0x18] sm:$0xff]
          %v1036 = vld [vmem:[#allocation2 + $0x20] sm:$0xff]
          %v1037 = vld [vmem:[#allocation2 + $0x28] sm:$0xff]
          %v1038 = vld [vmem:[#allocation2 + $0x30] sm:$0xff]
          %v1039 = vld [vmem:[#allocation2 + $0x38] sm:$0xff]
          %v1040 = vsub.f32 %v1024, %v1032
          %v1041 = vsub.f32 %v1025, %v1033
          %v1042 = vsub.f32 %v1026, %v1034
          %v1043 = vsub.f32 %v1027, %v1035
          %v1044 = vsub.f32 %v1028, %v1036
          %v1045 = vsub.f32 %v1029, %v1037
          %v1046 = vsub.f32 %v1030, %v1038
          %v1047 = vsub.f32 %v1031, %v1039
          %v1048 = vmul.f32 %v1040, 1.442695
          %v1049 = vpow.pop %v1048
          %v1050 = vmul.f32 %v1041, 1.442695
          %v1051 = vpow.pop %v1050
          %v1052 = vmul.f32 %v1042, 1.442695
          %v1053 = vpow.pop %v1052
          %v1054 = vmul.f32 %v1043, 1.442695
          %v1055 = vpow.pop %v1054
          %v1056 = vmul.f32 %v1044, 1.442695
          %v1057 = vpow.pop %v1056
          %v1058 = vmul.f32 %v1045, 1.442695
          %v1059 = vpow.pop %v1058
          %v1060 = vmul.f32 %v1046, 1.442695
          %v1061 = vpow.pop %v1060
          %v1062 = vmul.f32 %v1047, 1.442695
          %v1063 = vpow.pop %v1062
          %v1064 = vld [vmem:[#allocation3] sm:$0xff]
          %v1065 = vld [vmem:[#allocation3 + $0x8] sm:$0xff]
          %v1066 = vld [vmem:[#allocation3 + $0x10] sm:$0xff]
          %v1067 = vld [vmem:[#allocation3 + $0x18] sm:$0xff]
          %v1068 = vld [vmem:[#allocation3 + $0x20] sm:$0xff]
          %v1069 = vld [vmem:[#allocation3 + $0x28] sm:$0xff]
          %v1070 = vld [vmem:[#allocation3 + $0x30] sm:$0xff]
          %v1071 = vld [vmem:[#allocation3 + $0x38] sm:$0xff]
          %v1072 = vrcp.pop %v1064
          %v1073 = vmul.f32 %v1064, %v1072
          %v1074 = vsub.f32 1.0, %v1073
          %v1075 = vmul.f32 %v1072, %v1074
          %v1076 = vadd.f32 %v1072, %v1075
          %vm1077 = vweird.f32 %v1064
          %vm1078 = vweird.f32 %v1072
          %vm1079 = vmor %vm1077, %vm1078
          %v1080 = vsel %vm1079, %v1072, %v1076
          %v1081 = vand.u32 2147483647, %v1064
          %vm1082 = vcmp.eq.f32.partialorder %v1081, 8.507059e+37
          %v1083 = vand.u32 %v1064, 2147483648
          %v1084 = vor.u32 1.1754944e-38, %v1083
          %v1085 = vsel %vm1082, %v1084, %v1080
          %v1086 = vmul.f32 %v1049, %v1085
          %v1087 = vrcp.pop %v1065
          %v1088 = vmul.f32 %v1065, %v1087
          %v1089 = vsub.f32 1.0, %v1088
          %v1090 = vmul.f32 %v1087, %v1089
          %v1091 = vadd.f32 %v1087, %v1090
          %vm1092 = vweird.f32 %v1065
          %vm1093 = vweird.f32 %v1087
          %vm1094 = vmor %vm1092, %vm1093
          %v1095 = vsel %vm1094, %v1087, %v1091
          %v1096 = vand.u32 2147483647, %v1065
          %vm1097 = vcmp.eq.f32.partialorder %v1096, 8.507059e+37
          %v1098 = vand.u32 %v1065, 2147483648
          %v1099 = vor.u32 1.1754944e-38, %v1098
          %v1100 = vsel %vm1097, %v1099, %v1095
          %v1101 = vmul.f32 %v1051, %v1100
          %v1102 = vrcp.pop %v1066
          %v1103 = vmul.f32 %v1066, %v1102
          %v1104 = vsub.f32 1.0, %v1103
          %v1105 = vmul.f32 %v1102, %v1104
          %v1106 = vadd.f32 %v1102, %v1105
          %vm1107 = vweird.f32 %v1066
          %vm1108 = vweird.f32 %v1102
          %vm1109 = vmor %vm1107, %vm1108
          %v1110 = vsel %vm1109, %v1102, %v1106
          %v1111 = vand.u32 2147483647, %v1066
          %vm1112 = vcmp.eq.f32.partialorder %v1111, 8.507059e+37
          %v1113 = vand.u32 %v1066, 2147483648
          %v1114 = vor.u32 1.1754944e-38, %v1113
          %v1115 = vsel %vm1112, %v1114, %v1110
          %v1116 = vmul.f32 %v1053, %v1115
          %v1117 = vrcp.pop %v1067
          %v1118 = vmul.f32 %v1067, %v1117
          %v1119 = vsub.f32 1.0, %v1118
          %v1120 = vmul.f32 %v1117, %v1119
          %v1121 = vadd.f32 %v1117, %v1120
          %vm1122 = vweird.f32 %v1067
          %vm1123 = vweird.f32 %v1117
          %vm1124 = vmor %vm1122, %vm1123
          %v1125 = vsel %vm1124, %v1117, %v1121
          %v1126 = vand.u32 2147483647, %v1067
          %vm1127 = vcmp.eq.f32.partialorder %v1126, 8.507059e+37
          %v1128 = vand.u32 %v1067, 2147483648
          %v1129 = vor.u32 1.1754944e-38, %v1128
          %v1130 = vsel %vm1127, %v1129, %v1125
          %v1131 = vmul.f32 %v1055, %v1130
          %v1132 = vrcp.pop %v1068
          %v1133 = vmul.f32 %v1068, %v1132
          %v1134 = vsub.f32 1.0, %v1133
          %v1135 = vmul.f32 %v1132, %v1134
          %v1136 = vadd.f32 %v1132, %v1135
          %vm1137 = vweird.f32 %v1068
          %vm1138 = vweird.f32 %v1132
          %vm1139 = vmor %vm1137, %vm1138
          %v1140 = vsel %vm1139, %v1132, %v1136
          %v1141 = vand.u32 2147483647, %v1068
          %vm1142 = vcmp.eq.f32.partialorder %v1141, 8.507059e+37
          %v1143 = vand.u32 %v1068, 2147483648
          %v1144 = vor.u32 1.1754944e-38, %v1143
          %v1145 = vsel %vm1142, %v1144, %v1140
          %v1146 = vmul.f32 %v1057, %v1145
          %v1147 = vrcp.pop %v1069
          %v1148 = vmul.f32 %v1069, %v1147
          %v1149 = vsub.f32 1.0, %v1148
          %v1150 = vmul.f32 %v1147, %v1149
          %v1151 = vadd.f32 %v1147, %v1150
          %vm1152 = vweird.f32 %v1069
          %vm1153 = vweird.f32 %v1147
          %vm1154 = vmor %vm1152, %vm1153
          %v1155 = vsel %vm1154, %v1147, %v1151
          %v1156 = vand.u32 2147483647, %v1069
          %vm1157 = vcmp.eq.f32.partialorder %v1156, 8.507059e+37
          %v1158 = vand.u32 %v1069, 2147483648
          %v1159 = vor.u32 1.1754944e-38, %v1158
          %v1160 = vsel %vm1157, %v1159, %v1155
          %v1161 = vmul.f32 %v1059, %v1160
          %v1162 = vrcp.pop %v1070
          %v1163 = vmul.f32 %v1070, %v1162
          %v1164 = vsub.f32 1.0, %v1163
          %v1165 = vmul.f32 %v1162, %v1164
          %v1166 = vadd.f32 %v1162, %v1165
          %vm1167 = vweird.f32 %v1070
          %vm1168 = vweird.f32 %v1162
          %vm1169 = vmor %vm1167, %vm1168
          %v1170 = vsel %vm1169, %v1162, %v1166
          %v1171 = vand.u32 2147483647, %v1070
          %vm1172 = vcmp.eq.f32.partialorder %v1171, 8.507059e+37
          %v1173 = vand.u32 %v1070, 2147483648
          %v1174 = vor.u32 1.1754944e-38, %v1173
          %v1175 = vsel %vm1172, %v1174, %v1170
          %v1176 = vmul.f32 %v1061, %v1175
          %v1177 = vrcp.pop %v1071
          %v1178 = vmul.f32 %v1071, %v1177
          %v1179 = vsub.f32 1.0, %v1178
          %v1180 = vmul.f32 %v1177, %v1179
          %v1181 = vadd.f32 %v1177, %v1180
          %vm1182 = vweird.f32 %v1071
          %vm1183 = vweird.f32 %v1177
          %vm1184 = vmor %vm1182, %vm1183
          %v1185 = vsel %vm1184, %v1177, %v1181
          %v1186 = vand.u32 2147483647, %v1071
          %vm1187 = vcmp.eq.f32.partialorder %v1186, 8.507059e+37
          %v1188 = vand.u32 %v1071, 2147483648
          %v1189 = vor.u32 1.1754944e-38, %v1188
          %v1190 = vsel %vm1187, %v1189, %v1185
          %v1191 = vmul.f32 %v1063, %v1190
          %s1192 = smul.u32 %s24, 32
          %s1193 = smul.addr %s1192, 4
          %s1194 = scalar_lea.vmem [#allocation5], %s1193
          %v1195 = vld [vmem:[%s1194] sm:$0xff]
          %v1196 = vld [vmem:[%s1194 + $0x8] sm:$0xff]
          %v1197 = vld [vmem:[%s1194 + $0x10] sm:$0xff]
          %v1198 = vld [vmem:[%s1194 + $0x18] sm:$0xff]
          %v1199 = vld [vmem:[%s1194 + $0x20] sm:$0xff]
          %v1200 = vld [vmem:[%s1194 + $0x28] sm:$0xff]
          %v1201 = vld [vmem:[%s1194 + $0x30] sm:$0xff]
          %v1202 = vld [vmem:[%s1194 + $0x38] sm:$0xff]
          %v1203 = vld [vmem:[%s1194 + $0x40] sm:$0xff]
          %v1204 = vld [vmem:[%s1194 + $0x48] sm:$0xff]
          %v1205 = vld [vmem:[%s1194 + $0x50] sm:$0xff]
          %v1206 = vld [vmem:[%s1194 + $0x58] sm:$0xff]
          %v1207 = vld [vmem:[%s1194 + $0x60] sm:$0xff]
          %v1208 = vld [vmem:[%s1194 + $0x68] sm:$0xff]
          %v1209 = vld [vmem:[%s1194 + $0x70] sm:$0xff]
          %v1210 = vld [vmem:[%s1194 + $0x78] sm:$0xff]
          %v1211 = vunpack.c.l.bf16 %v1195
          %v1212 = vunpack.c.h.bf16 %v1195
          %v1213 = vunpack.c.l.bf16 %v1196
          %v1214 = vunpack.c.h.bf16 %v1196
          %v1215 = vunpack.c.l.bf16 %v1197
          %v1216 = vunpack.c.h.bf16 %v1197
          %v1217 = vunpack.c.l.bf16 %v1198
          %v1218 = vunpack.c.h.bf16 %v1198
          %v1219 = vunpack.c.l.bf16 %v1199
          %v1220 = vunpack.c.h.bf16 %v1199
          %v1221 = vunpack.c.l.bf16 %v1200
          %v1222 = vunpack.c.h.bf16 %v1200
          %v1223 = vunpack.c.l.bf16 %v1201
          %v1224 = vunpack.c.h.bf16 %v1201
          %v1225 = vunpack.c.l.bf16 %v1202
          %v1226 = vunpack.c.h.bf16 %v1202
          %v1227 = vunpack.c.l.bf16 %v1203
          %v1228 = vunpack.c.h.bf16 %v1203
          %v1229 = vunpack.c.l.bf16 %v1204
          %v1230 = vunpack.c.h.bf16 %v1204
          %v1231 = vunpack.c.l.bf16 %v1205
          %v1232 = vunpack.c.h.bf16 %v1205
          %v1233 = vunpack.c.l.bf16 %v1206
          %v1234 = vunpack.c.h.bf16 %v1206
          %v1235 = vunpack.c.l.bf16 %v1207
          %v1236 = vunpack.c.h.bf16 %v1207
          %v1237 = vunpack.c.l.bf16 %v1208
          %v1238 = vunpack.c.h.bf16 %v1208
          %v1239 = vunpack.c.l.bf16 %v1209
          %v1240 = vunpack.c.h.bf16 %v1209
          %v1241 = vunpack.c.l.bf16 %v1210
          %v1242 = vunpack.c.h.bf16 %v1210
          %1244 = vset.pattern.permute.xlu0 0
          %1245 = vperm.xlu0 %1244, %v1086
          %v1246 = vpop.permute.xlu0 %1245
          %1249 = vset.pattern.permute.xlu0 0
          %1250 = vperm.xlu0 %1249, %v1101
          %v1251 = vpop.permute.xlu0 %1250
          %1254 = vset.pattern.permute.xlu0 0
          %1255 = vperm.xlu0 %1254, %v1116
          %v1256 = vpop.permute.xlu0 %1255
          %1259 = vset.pattern.permute.xlu0 0
          %1260 = vperm.xlu0 %1259, %v1131
          %v1261 = vpop.permute.xlu0 %1260
          %1264 = vset.pattern.permute.xlu0 0
          %1265 = vperm.xlu0 %1264, %v1146
          %v1266 = vpop.permute.xlu0 %1265
          %1269 = vset.pattern.permute.xlu0 0
          %1270 = vperm.xlu0 %1269, %v1161
          %v1271 = vpop.permute.xlu0 %1270
          %1274 = vset.pattern.permute.xlu0 0
          %1275 = vperm.xlu0 %1274, %v1176
          %v1276 = vpop.permute.xlu0 %1275
          %1279 = vset.pattern.permute.xlu0 0
          %1280 = vperm.xlu0 %1279, %v1191
          %v1281 = vpop.permute.xlu0 %1280
          %v1283 = vmul.f32 %v1211, %v1246
          %v1284 = vmul.f32 %v1212, %v1246
          %v1285 = vmul.f32 %v1213, %v1246
          %v1286 = vmul.f32 %v1214, %v1246
          %v1287 = vmul.f32 %v1215, %v1251
          %v1288 = vmul.f32 %v1216, %v1251
          %v1289 = vmul.f32 %v1217, %v1251
          %v1290 = vmul.f32 %v1218, %v1251
          %v1291 = vmul.f32 %v1219, %v1256
          %v1292 = vmul.f32 %v1220, %v1256
          %v1293 = vmul.f32 %v1221, %v1256
          %v1294 = vmul.f32 %v1222, %v1256
          %v1295 = vmul.f32 %v1223, %v1261
          %v1296 = vmul.f32 %v1224, %v1261
          %v1297 = vmul.f32 %v1225, %v1261
          %v1298 = vmul.f32 %v1226, %v1261
          %v1299 = vmul.f32 %v1227, %v1266
          %v1300 = vmul.f32 %v1228, %v1266
          %v1301 = vmul.f32 %v1229, %v1266
          %v1302 = vmul.f32 %v1230, %v1266
          %v1303 = vmul.f32 %v1231, %v1271
          %v1304 = vmul.f32 %v1232, %v1271
          %v1305 = vmul.f32 %v1233, %v1271
          %v1306 = vmul.f32 %v1234, %v1271
          %v1307 = vmul.f32 %v1235, %v1276
          %v1308 = vmul.f32 %v1236, %v1276
          %v1309 = vmul.f32 %v1237, %v1276
          %v1310 = vmul.f32 %v1238, %v1276
          %v1311 = vmul.f32 %v1239, %v1281
          %v1312 = vmul.f32 %v1240, %v1281
          %v1313 = vmul.f32 %v1241, %v1281
          %v1314 = vmul.f32 %v1242, %v1281
          %v1315 = vpack.c.bf16 %v1284, %v1283
          %v1316 = vpack.c.bf16 %v1286, %v1285
          %v1317 = vpack.c.bf16 %v1288, %v1287
          %v1318 = vpack.c.bf16 %v1290, %v1289
          %v1319 = vpack.c.bf16 %v1292, %v1291
          %v1320 = vpack.c.bf16 %v1294, %v1293
          %v1321 = vpack.c.bf16 %v1296, %v1295
          %v1322 = vpack.c.bf16 %v1298, %v1297
          %v1323 = vpack.c.bf16 %v1300, %v1299
          %v1324 = vpack.c.bf16 %v1302, %v1301
          %v1325 = vpack.c.bf16 %v1304, %v1303
          %v1326 = vpack.c.bf16 %v1306, %v1305
          %v1327 = vpack.c.bf16 %v1308, %v1307
          %v1328 = vpack.c.bf16 %v1310, %v1309
          %v1329 = vpack.c.bf16 %v1312, %v1311
          %v1330 = vpack.c.bf16 %v1314, %v1313
          %1331 = vst [vmem:[%s186] sm:$0xff] %v1315
          %1332 = vst [vmem:[%s186 + $0x8] sm:$0xff] %v1316
          %1333 = vst [vmem:[%s186 + $0x10] sm:$0xff] %v1317
          %1334 = vst [vmem:[%s186 + $0x18] sm:$0xff] %v1318
          %1335 = vst [vmem:[%s186 + $0x20] sm:$0xff] %v1319
          %1336 = vst [vmem:[%s186 + $0x28] sm:$0xff] %v1320
          %1337 = vst [vmem:[%s186 + $0x30] sm:$0xff] %v1321
          %1338 = vst [vmem:[%s186 + $0x38] sm:$0xff] %v1322
          %1339 = vst [vmem:[%s186 + $0x40] sm:$0xff] %v1323
          %1340 = vst [vmem:[%s186 + $0x48] sm:$0xff] %v1324
          %1341 = vst [vmem:[%s186 + $0x50] sm:$0xff] %v1325
          %1342 = vst [vmem:[%s186 + $0x58] sm:$0xff] %v1326
          %1343 = vst [vmem:[%s186 + $0x60] sm:$0xff] %v1327
          %1344 = vst [vmem:[%s186 + $0x68] sm:$0xff] %v1328
          %1345 = vst [vmem:[%s186 + $0x70] sm:$0xff] %v1329
          %1346 = vst [vmem:[%s186 + $0x78] sm:$0xff] %v1330
        $region44: #{tpu_custom_call.1} parent=27 // pred_fallthru
          _
        %s1347 = sand.u32 %s94, 1
        %s1348 = scalar_lea.sflag [#allocation8], %s1347
        %s1349 = sand.u32 %s94, 1
        %s1350 = smul.addr %s1349, 128
        %s1351 = scalar_lea.vmem [#allocation9], %s1350
        // Predicated region
        $region45: #{tpu_custom_call.1} parent=27 // pred_check
          %p1352 = pneg %p104
        $region46: #{tpu_custom_call.1} parent=27 // pred_check_branch
          %1354 = sbr.rel (%p1352) target = $region48
        $region47: #{tpu_custom_call.1} parent=27 // pred_region
          %s1355 = smul.u32 %s24, %s23
          %s1356 = smul.u32 4, %s1355
          %1358 = vsyncadd %s1348, 0
          %s1359 = smul.addr %s1356, 4
          %s1360 = scalar_lea.hbm %s2, %s1359
          %s1361 = sshll.u32 %s1351, 4
          %s1362 = int_to_ptr.vmem [resolvable:$true] %s1361
          %s1363 = sshll.u32 %s1360, 4
          %s1364 = int_to_ptr.hbm [resolvable:$true] %s1363
          %1369 = dma.vmem_to_hbm [thread:$0]  %s1362, 2048, %s1364, %s1348, 256, 512, 16
        $region48: #{tpu_custom_call.1} parent=27 // pred_fallthru
          _
      $region28: #{tpu_custom_call.1} parent=5 // pred_fallthru
        _
      %p1370 = scmp.le.s32.totalorder 2, %s14
      // Predicated region
      $region49: #{tpu_custom_call.1} parent=5 // pred_check
        %p1371 = pneg %p1370
      $region50: #{tpu_custom_call.1} parent=5 // pred_check_branch
        %1373 = sbr.rel (%p1371) target = $region52
      $region51: #{tpu_custom_call.1} parent=5 // pred_region
        %s1374 = ssub.s32 %s14, 2
        // Predicated region
        $region53: #{tpu_custom_call.1} parent=51 // pred_check
          %p1375 = pneg %p110
        $region54: #{tpu_custom_call.1} parent=51 // pred_check_branch
          %1377 = sbr.rel (%p1375) target = $region56
        $region55: #{tpu_custom_call.1} parent=51 // pred_region
          %s1378 = sand.u32 %s95, 1
          %s1379 = scalar_lea.sflag [#allocation8], %s1378
          %s1380 = sand.u32 %s95, 1
          %s1381 = smul.addr %s1380, 128
          %s1382 = scalar_lea.vmem [#allocation9], %s1381
          %1384 = dma.done %s1379, 2048
        $region56: #{tpu_custom_call.1} parent=51 // pred_fallthru
          _
      $region52: #{tpu_custom_call.1} parent=5 // pred_fallthru
        _
    $region6: #{tpu_custom_call.1} parent=1 // loop_footer
      %s18 = sadd.s32 1, %s14
    $region7: #{tpu_custom_call.1} parent=1 // loop_footer_branch
      %13 = sbr.rel target = $region3
    $region8: #{tpu_custom_call.1} parent=1 // loop_exit
      _
    %1385 = vsyncpa [#allocation7], 1
    %s1386 = scalar_lea.sflag [#allocation7], 1
    %1387 = vsyncpa %s1386, 1
    %1388 = vsyncpa [#allocation8], 1
    %s1389 = scalar_lea.sflag [#allocation8], 1
    %1390 = vsyncpa %s1389, 1

</llo_original>
